<compile_context>
chip_gen: v7x
topology: tpu7x:2x2x1
jax: 0.10.0
libtpu: 0.0.40
codegen_flags: <defaults>
</compile_context>

<pallas_src>
import jax
import jax.numpy as jnp
from jax.experimental import pallas as pl
from jax.experimental.pallas import tpu as pltpu


# ---------------------------------------------------------------------------
# Fused kernel: whole CNNMnist forward for one batch tile.
#   xe_ref  : (TB, 14, WC)   bf16, image rows 0,2,...,26  (WC = 28*Cin, lane = w*Cin+c)
#   xo_ref  : (TB, 14, WC)   bf16, image rows 1,3,...,27
#   w1e/w1o : (5*WC, 120)    bf16, K-stacked Toeplitz conv1 weights (even/odd out cols)
#   b1_ref  : (1, 120)       f32,  conv1 bias tiled over the 12 pooled cols
#   w2e/w2o : (600, 80)      bf16, K-stacked Toeplitz conv2 weights (even/odd out cols)
#   b2_ref  : (1, 80)        f32,  conv2 bias tiled over the 4 pooled cols
#   fw1_ref : (320, 50)      bf16, fc1 weights permuted to HWC flatten order
#   fb1_ref : (1, 50)        f32
#   fw2_ref : (50, NCP)      bf16, fc2 weights zero-padded to NCP (=128) lanes
#   fb2_ref : (1, NCP)       f32,  padded classes get -1e30
#   out_ref : (TB, NCP)      f32,  log_softmax logits (padded cols are junk)
# ---------------------------------------------------------------------------
def cnn_mnist_kernel(xe_ref, xo_ref, w1e_ref, w1o_ref, b1_ref,
                     w2e_ref, w2o_ref, b2_ref,
                     fw1_ref, fb1_ref, fw2_ref, fb2_ref, out_ref):
    TB = xe_ref.shape[0]
    WC = xe_ref.shape[2]            # 28 * Cin
    f32 = jnp.float32
    bf16 = jnp.bfloat16

    xe = xe_ref[...]                # (TB, 14, WC)
    xo = xo_ref[...]                # (TB, 14, WC)

    # ---- conv1 + 2x2 max-pool, fused on the MXU ----------------------------
    # slab_a row i = lane-concat of the 5 kernel rows feeding conv row 2i
    # slab_b row i = same for conv row 2i+1          (i = pooled row, 0..11)
    slab_a = jnp.concatenate(
        [xe[:, 0:12], xo[:, 0:12], xe[:, 1:13], xo[:, 1:13], xe[:, 2:14]],
        axis=-1).reshape(TB * 12, 5 * WC)
    slab_b = jnp.concatenate(
        [xo[:, 0:12], xe[:, 1:13], xo[:, 1:13], xe[:, 2:14], xo[:, 2:14]],
        axis=-1).reshape(TB * 12, 5 * WC)

    w1e = w1e_ref[...]
    w1o = w1o_ref[...]
    c_ee = jnp.dot(slab_a, w1e, preferred_element_type=f32)   # (2i,   2j)
    c_eo = jnp.dot(slab_a, w1o, preferred_element_type=f32)   # (2i,   2j+1)
    c_oe = jnp.dot(slab_b, w1e, preferred_element_type=f32)   # (2i+1, 2j)
    c_oo = jnp.dot(slab_b, w1o, preferred_element_type=f32)   # (2i+1, 2j+1)
    pool1 = jnp.maximum(jnp.maximum(c_ee, c_eo), jnp.maximum(c_oe, c_oo))
    p1 = jnp.maximum(pool1 + b1_ref[...], 0.0)                # (TB*12, 120)
    p1 = p1.astype(bf16).reshape(TB, 12, 120)                 # lane = j*10 + ch

    # ---- conv2 (Dropout2d = identity in eval mode) + 2x2 max-pool ----------
    slab2 = jnp.concatenate([p1[:, ky:ky + 8] for ky in range(5)],
                            axis=-1).reshape(TB * 8, 5 * 120)
    c2e = jnp.dot(slab2, w2e_ref[...], preferred_element_type=f32)
    c2o = jnp.dot(slab2, w2o_ref[...], preferred_element_type=f32)
    wpool2 = jnp.maximum(c2e, c2o).reshape(TB, 8, 80)         # lane = j2*20 + ch
    hpool2 = jnp.max(wpool2.reshape(TB, 4, 2, 80), axis=2)    # tiny row-pair max
    p2 = jnp.maximum(hpool2 + b2_ref[...], 0.0)               # (TB, 4, 80)

    # ---- flatten (h, w, c order matches the permuted fc1 weights) + head ---
    h = p2.reshape(TB, 320).astype(bf16)
    z1 = jnp.dot(h, fw1_ref[...], preferred_element_type=f32) + fb1_ref[...]
    z1 = jnp.maximum(z1, 0.0).astype(bf16)
    # F.dropout(training=False) -> identity
    z2 = jnp.dot(z1, fw2_ref[...], preferred_element_type=f32) + fb2_ref[...]

    # log_softmax over the padded class dim, all in f32; padded classes carry
    # bias -1e30 so exp(z2 - m) == 0 and they can never win the max.
    m = jnp.max(z2, axis=1, keepdims=True)
    lse = m + jnp.log(jnp.sum(jnp.exp(z2 - m), axis=1, keepdims=True))
    out_ref[...] = z2 - lse


# ---------------------------------------------------------------------------
# Wrapper: one-time weight restructuring (plain JAX) + pallas_call.
# ---------------------------------------------------------------------------
def _toeplitz_stacked(w_oihw, in_w, out_cols):
    """5x5 valid conv -> K-stacked Toeplitz matmul weights.

    Row index = ky*(in_w*Cin) + ix*Cin + c  (matches a lane-concatenated slab
    of the 5 kernel-row input views); col index = j*Cout + o where j enumerates
    the requested output columns `out_cols`.
    """
    Cout, Cin, KH, KW = w_oihw.shape
    w_hwio = jnp.transpose(w_oihw.astype(jnp.float32), (2, 3, 1, 0))  # (KH,KW,Cin,Cout)
    out_cols = list(out_cols)
    t = jnp.zeros((KH, in_w, Cin, len(out_cols), Cout), jnp.float32)
    for j, ox in enumerate(out_cols):
        t = t.at[:, ox:ox + KW, :, j, :].set(w_hwio)
    return t.reshape(KH * in_w * Cin, len(out_cols) * Cout)


def _pick_batch_tile(B, batch_tile):
    if B <= 16:
        return B                      # single tile; block dim == full array dim
    half = -(-B // 2)                 # >= 2 tiles so both v7x TensorCores get work
    tb = min(batch_tile, ((half + 7) // 8) * 8)   # multiple of 8 (sublane)
    return max(8, tb)


def cnn_mnist_forward(x_nchw, params, *, batch_tile=128):
    """Fused CNNMnist forward (eval mode). x_nchw: (B, Cin, 28, 28) -> (B, num_classes)."""
    w1, b1, w2, b2, fw1, fb1, fw2, fb2 = params
    B, Cin, H, W = x_nchw.shape
    assert (H, W) == (28, 28), "CNNMnist requires 28x28 inputs (fc1 expects 320 features)"
    num_classes = fw2.shape[0]
    nh = fw1.shape[0]                                     # 50
    ncp = max(128, ((num_classes + 127) // 128) * 128)    # lane-dense class dim
    WC = 28 * Cin

    # Input: NCHW -> (B, 28, 28*Cin) bf16 (lane = w*Cin + c), rows deinterleaved
    # into even/odd so every in-kernel slab slice is a contiguous row window.
    x = jnp.transpose(x_nchw, (0, 2, 3, 1)).reshape(B, 28, WC).astype(jnp.bfloat16)
    xe = x[:, 0::2, :]                                    # (B, 14, WC)
    xo = x[:, 1::2, :]                                    # (B, 14, WC)

    # Conv weights: K-stacked Toeplitz banks for even / odd output columns.
    w1e = _toeplitz_stacked(w1, 28, range(0, 24, 2)).astype(jnp.bfloat16)  # (5*WC, 120)
    w1o = _toeplitz_stacked(w1, 28, range(1, 24, 2)).astype(jnp.bfloat16)
    w2e = _toeplitz_stacked(w2, 12, range(0, 8, 2)).astype(jnp.bfloat16)   # (600, 80)
    w2o = _toeplitz_stacked(w2, 12, range(1, 8, 2)).astype(jnp.bfloat16)
    b1t = jnp.tile(b1.astype(jnp.float32), 12).reshape(1, 120)
    b2t = jnp.tile(b2.astype(jnp.float32), 4).reshape(1, 80)

    # fc1: PyTorch flattens NCHW (c*16 + h*4 + w); the kernel flattens HWC
    # (h*80 + w*20 + c) -> permute the weight columns instead of the activation.
    fw1_hwc = jnp.transpose(fw1.astype(jnp.float32).reshape(nh, 20, 4, 4),
                            (2, 3, 1, 0)).reshape(320, nh).astype(jnp.bfloat16)
    fb1r = fb1.astype(jnp.float32).reshape(1, nh)

    # fc2: pad classes to a full 128-lane width; padded columns get weight 0
    # and (f32) bias -1e30 so they never affect the softmax.
    fw2p = jnp.zeros((nh, ncp), jnp.float32).at[:, :num_classes].set(
        fw2.astype(jnp.float32).T).astype(jnp.bfloat16)
    fb2p = jnp.full((1, ncp), -1e30, jnp.float32).at[0, :num_classes].set(
        fb2.astype(jnp.float32))

    TB = _pick_batch_tile(B, batch_tile)
    grid = (pl.cdiv(B, TB),)

    def whole(a):
        return pl.BlockSpec(a.shape, lambda b: (0,) * a.ndim)

    flops = 2 * B * (4 * 12 * (5 * WC) * 120 + 2 * 8 * 600 * 80 + 320 * nh + nh * ncp)
    bytes_accessed = (int(xe.size) + int(xo.size)) * 2 + B * ncp * 4 + sum(
        int(a.size) * a.dtype.itemsize
        for a in (w1e, w1o, b1t, w2e, w2o, b2t, fw1_hwc, fb1r, fw2p, fb2p))

    out_full = pl.pallas_call(
        cnn_mnist_kernel,
        out_shape=jax.ShapeDtypeStruct((B, ncp), jnp.float32),
        grid=grid,
        in_specs=[pl.BlockSpec((TB, 14, WC), lambda b: (b, 0, 0)),
                  pl.BlockSpec((TB, 14, WC), lambda b: (b, 0, 0)),
                  whole(w1e), whole(w1o), whole(b1t),
                  whole(w2e), whole(w2o), whole(b2t),
                  whole(fw1_hwc), whole(fb1r), whole(fw2p), whole(fb2p)],
        out_specs=pl.BlockSpec((TB, ncp), lambda b: (b, 0)),
        compiler_params=pltpu.CompilerParams(
            dimension_semantics=("parallel",),
            vmem_limit_bytes=32 * 1024 * 1024),
        cost_estimate=pl.CostEstimate(flops=int(flops),
                                      transcendentals=int(B * (ncp + 1)),
                                      bytes_accessed=int(bytes_accessed)),
    )(xe, xo, w1e, w1o, b1t, w2e, w2o, b2t, fw1_hwc, fb1r, fw2p, fb2p)

    return out_full[:, :num_classes]


# ---------------------------------------------------------------------------
# Pure-JAX f32 reference (eval mode), NCHW like PyTorch, for correctness check.
# ---------------------------------------------------------------------------
def reference_forward(x_nchw, params):
    w1, b1, w2, b2, fw1, fb1, fw2, fb2 = params
    prec = jax.lax.Precision.HIGHEST
    dn = ("NCHW", "OIHW", "NCHW")
    y = jax.lax.conv_general_dilated(x_nchw, w1, (1, 1), "VALID",
                                     dimension_numbers=dn, precision=prec)
    y = y + b1[None, :, None, None]
    y = jax.lax.reduce_window(y, -jnp.inf, jax.lax.max,
                              (1, 1, 2, 2), (1, 1, 2, 2), "VALID")
    y = jnp.maximum(y, 0.0)
    y = jax.lax.conv_general_dilated(y, w2, (1, 1), "VALID",
                                     dimension_numbers=dn, precision=prec)
    y = y + b2[None, :, None, None]
    y = jax.lax.reduce_window(y, -jnp.inf, jax.lax.max,
                              (1, 1, 2, 2), (1, 1, 2, 2), "VALID")
    y = jnp.maximum(y, 0.0)
    y = y.reshape(y.shape[0], -1)
    y = jnp.maximum(jnp.dot(y, fw1.T, precision=prec) + fb1, 0.0)
    y = jnp.dot(y, fw2.T, precision=prec) + fb2
    return jax.nn.log_softmax(y, axis=1)


if __name__ == "__main__":
    B, C, NUM_CLASSES = 2, 1, 10   # 28x28 input is required so fc1 sees 320 features

    key = jax.random.PRNGKey(0)
    keys = jax.random.split(key, 9)

    def uni(k, shape, fan_in):
        bound = 1.0 / (float(fan_in) ** 0.5)
        return jax.random.uniform(k, shape, jnp.float32, -bound, bound)

    w1 = uni(keys[0], (10, C, 5, 5), C * 25)
    b1 = uni(keys[1], (10,), C * 25)
    w2 = uni(keys[2], (20, 10, 5, 5), 10 * 25)
    b2 = uni(keys[3], (20,), 10 * 25)
    fw1 = uni(keys[4], (50, 320), 320)
    fb1 = uni(keys[5], (50,), 320)
    fw2 = uni(keys[6], (NUM_CLASSES, 50), 50)
    fb2 = uni(keys[7], (NUM_CLASSES,), 50)
    params = (w1, b1, w2, b2, fw1, fb1, fw2, fb2)

    x = jax.random.normal(keys[8], (B, C, 28, 28), dtype=jnp.float32)

    fwd = jax.jit(lambda xx, pp: cnn_mnist_forward(xx, pp))
    out = jax.block_until_ready(fwd(x, params))
    assert out.shape == (B, NUM_CLASSES)

    ref = jax.block_until_ready(reference_forward(x, params))
    # bf16 MXU passes vs the f32 reference -> tolerance loosened (per review).
    if not jnp.allclose(out, ref, atol=5e-2, rtol=5e-2):
        raise AssertionError("Pallas output does not match JAX reference")

    print("KERNEL_OK")
</pallas_src>

<mosaic_0001>
module attributes {stable_mosaic.version = 11 : i64} {
  func.func @cnn_mnist_kernel(%arg0: i32, %arg1: memref<2x14x28xbf16, #tpu.memory_space<vmem>>, %arg2: memref<2x14x28xbf16, #tpu.memory_space<vmem>>, %arg3: memref<140x120xbf16, #tpu.memory_space<vmem>>, %arg4: memref<140x120xbf16, #tpu.memory_space<vmem>>, %arg5: memref<1x120xf32, #tpu.memory_space<vmem>>, %arg6: memref<600x80xbf16, #tpu.memory_space<vmem>>, %arg7: memref<600x80xbf16, #tpu.memory_space<vmem>>, %arg8: memref<1x80xf32, #tpu.memory_space<vmem>>, %arg9: memref<320x50xbf16, #tpu.memory_space<vmem>>, %arg10: memref<1x50xf32, #tpu.memory_space<vmem>>, %arg11: memref<50x128xbf16, #tpu.memory_space<vmem>>, %arg12: memref<1x128xf32, #tpu.memory_space<vmem>>, %arg13: memref<2x128xf32, #tpu.memory_space<vmem>>) attributes {dimension_semantics = [#tpu.dimension_semantics<parallel>], iteration_bounds = array<i64: 1>, scalar_prefetch = 0 : i64, scratch_operands = 0 : i64, tpu.core_type = #tpu.core_type<tc>, window_params = [{transform_indices = @transform_0, window_bounds = array<i64: 2, 14, 28>}, {transform_indices = @transform_1, window_bounds = array<i64: 2, 14, 28>}, {pipeline_mode = #tpu.pipeline_mode<synchronous>, transform_indices = @transform_2, window_bounds = array<i64: 140, 120>}, {pipeline_mode = #tpu.pipeline_mode<synchronous>, transform_indices = @transform_3, window_bounds = array<i64: 140, 120>}, {pipeline_mode = #tpu.pipeline_mode<synchronous>, transform_indices = @transform_4, window_bounds = array<i64: 1, 120>}, {pipeline_mode = #tpu.pipeline_mode<synchronous>, transform_indices = @transform_5, window_bounds = array<i64: 600, 80>}, {pipeline_mode = #tpu.pipeline_mode<synchronous>, transform_indices = @transform_6, window_bounds = array<i64: 600, 80>}, {pipeline_mode = #tpu.pipeline_mode<synchronous>, transform_indices = @transform_7, window_bounds = array<i64: 1, 80>}, {pipeline_mode = #tpu.pipeline_mode<synchronous>, transform_indices = @transform_8, window_bounds = array<i64: 320, 50>}, {pipeline_mode = #tpu.pipeline_mode<synchronous>, transform_indices = @transform_9, window_bounds = array<i64: 1, 50>}, {pipeline_mode = #tpu.pipeline_mode<synchronous>, transform_indices = @transform_10, window_bounds = array<i64: 50, 128>}, {pipeline_mode = #tpu.pipeline_mode<synchronous>, transform_indices = @transform_11, window_bounds = array<i64: 1, 128>}, {transform_indices = @transform_12, window_bounds = array<i64: 2, 128>}]} {
    %c0 = arith.constant 0 : index
    %c0_0 = arith.constant 0 : index
    %c0_1 = arith.constant 0 : index
    %0 = vector.load %arg1[%c0, %c0_0, %c0_1] : memref<2x14x28xbf16, #tpu.memory_space<vmem>>, vector<2x14x28xbf16>
    %c0_2 = arith.constant 0 : index
    %c0_3 = arith.constant 0 : index
    %c0_4 = arith.constant 0 : index
    %1 = vector.load %arg2[%c0_2, %c0_3, %c0_4] : memref<2x14x28xbf16, #tpu.memory_space<vmem>>, vector<2x14x28xbf16>
    %2 = vector.extract_strided_slice %0 {offsets = [0, 0, 0], sizes = [2, 12, 28], strides = [1, 1, 1]} : vector<2x14x28xbf16> to vector<2x12x28xbf16>
    %3 = vector.extract_strided_slice %1 {offsets = [0, 0, 0], sizes = [2, 12, 28], strides = [1, 1, 1]} : vector<2x14x28xbf16> to vector<2x12x28xbf16>
    %4 = vector.extract_strided_slice %0 {offsets = [0, 1, 0], sizes = [2, 12, 28], strides = [1, 1, 1]} : vector<2x14x28xbf16> to vector<2x12x28xbf16>
    %5 = vector.extract_strided_slice %1 {offsets = [0, 1, 0], sizes = [2, 12, 28], strides = [1, 1, 1]} : vector<2x14x28xbf16> to vector<2x12x28xbf16>
    %6 = vector.extract_strided_slice %0 {offsets = [0, 2, 0], sizes = [2, 12, 28], strides = [1, 1, 1]} : vector<2x14x28xbf16> to vector<2x12x28xbf16>
    %7 = tpu.concatenate %2, %3, %4, %5, %6 in 2 : vector<2x12x28xbf16>, vector<2x12x28xbf16>, vector<2x12x28xbf16>, vector<2x12x28xbf16>, vector<2x12x28xbf16> -> vector<2x12x140xbf16>
    %8 = vector.shape_cast %7 : vector<2x12x140xbf16> to vector<24x140xbf16>
    %9 = vector.extract_strided_slice %1 {offsets = [0, 0, 0], sizes = [2, 12, 28], strides = [1, 1, 1]} : vector<2x14x28xbf16> to vector<2x12x28xbf16>
    %10 = vector.extract_strided_slice %0 {offsets = [0, 1, 0], sizes = [2, 12, 28], strides = [1, 1, 1]} : vector<2x14x28xbf16> to vector<2x12x28xbf16>
    %11 = vector.extract_strided_slice %1 {offsets = [0, 1, 0], sizes = [2, 12, 28], strides = [1, 1, 1]} : vector<2x14x28xbf16> to vector<2x12x28xbf16>
    %12 = vector.extract_strided_slice %0 {offsets = [0, 2, 0], sizes = [2, 12, 28], strides = [1, 1, 1]} : vector<2x14x28xbf16> to vector<2x12x28xbf16>
    %13 = vector.extract_strided_slice %1 {offsets = [0, 2, 0], sizes = [2, 12, 28], strides = [1, 1, 1]} : vector<2x14x28xbf16> to vector<2x12x28xbf16>
    %14 = tpu.concatenate %9, %10, %11, %12, %13 in 2 : vector<2x12x28xbf16>, vector<2x12x28xbf16>, vector<2x12x28xbf16>, vector<2x12x28xbf16>, vector<2x12x28xbf16> -> vector<2x12x140xbf16>
    %15 = vector.shape_cast %14 : vector<2x12x140xbf16> to vector<24x140xbf16>
    %c0_5 = arith.constant 0 : index
    %c0_6 = arith.constant 0 : index
    %16 = vector.load %arg3[%c0_5, %c0_6] : memref<140x120xbf16, #tpu.memory_space<vmem>>, vector<140x120xbf16>
    %c0_7 = arith.constant 0 : index
    %c0_8 = arith.constant 0 : index
    %17 = vector.load %arg4[%c0_7, %c0_8] : memref<140x120xbf16, #tpu.memory_space<vmem>>, vector<140x120xbf16>
    %cst = arith.constant dense<0.000000e+00> : vector<24x120xf32>
    %18 = tpu.matmul %8, %16, %cst {dimension_numbers = #tpu.dot_dimension_numbers<[1], [0], [0], [1], [0, 0, 1, 1], [], []>} : vector<24x140xbf16>, vector<140x120xbf16>, vector<24x120xf32> -> vector<24x120xf32>
    %cst_9 = arith.constant dense<0.000000e+00> : vector<24x120xf32>
    %19 = tpu.matmul %8, %17, %cst_9 {dimension_numbers = #tpu.dot_dimension_numbers<[1], [0], [0], [1], [0, 0, 1, 1], [], []>} : vector<24x140xbf16>, vector<140x120xbf16>, vector<24x120xf32> -> vector<24x120xf32>
    %cst_10 = arith.constant dense<0.000000e+00> : vector<24x120xf32>
    %20 = tpu.matmul %15, %16, %cst_10 {dimension_numbers = #tpu.dot_dimension_numbers<[1], [0], [0], [1], [0, 0, 1, 1], [], []>} : vector<24x140xbf16>, vector<140x120xbf16>, vector<24x120xf32> -> vector<24x120xf32>
    %cst_11 = arith.constant dense<0.000000e+00> : vector<24x120xf32>
    %21 = tpu.matmul %15, %17, %cst_11 {dimension_numbers = #tpu.dot_dimension_numbers<[1], [0], [0], [1], [0, 0, 1, 1], [], []>} : vector<24x140xbf16>, vector<140x120xbf16>, vector<24x120xf32> -> vector<24x120xf32>
    %22 = arith.maximumf %18, %19 : vector<24x120xf32>
    %23 = arith.maximumf %20, %21 : vector<24x120xf32>
    %24 = arith.maximumf %22, %23 : vector<24x120xf32>
    %c0_12 = arith.constant 0 : index
    %c0_13 = arith.constant 0 : index
    %25 = vector.load %arg5[%c0_12, %c0_13] : memref<1x120xf32, #tpu.memory_space<vmem>>, vector<1x120xf32>
    %26 = vector.broadcast %25 : vector<1x120xf32> to vector<24x120xf32>
    %27 = arith.addf %24, %26 : vector<24x120xf32>
    %cst_14 = arith.constant 0.000000e+00 : f32
    %28 = vector.broadcast %cst_14 : f32 to vector<24x120xf32>
    %29 = arith.maximumf %27, %28 : vector<24x120xf32>
    %30 = arith.truncf %29 : vector<24x120xf32> to vector<24x120xbf16>
    %31 = vector.shape_cast %30 : vector<24x120xbf16> to vector<2x12x120xbf16>
    %32 = vector.extract_strided_slice %31 {offsets = [0, 0, 0], sizes = [2, 8, 120], strides = [1, 1, 1]} : vector<2x12x120xbf16> to vector<2x8x120xbf16>
    %33 = vector.extract_strided_slice %31 {offsets = [0, 1, 0], sizes = [2, 8, 120], strides = [1, 1, 1]} : vector<2x12x120xbf16> to vector<2x8x120xbf16>
    %34 = vector.extract_strided_slice %31 {offsets = [0, 2, 0], sizes = [2, 8, 120], strides = [1, 1, 1]} : vector<2x12x120xbf16> to vector<2x8x120xbf16>
    %35 = vector.extract_strided_slice %31 {offsets = [0, 3, 0], sizes = [2, 8, 120], strides = [1, 1, 1]} : vector<2x12x120xbf16> to vector<2x8x120xbf16>
    %36 = vector.extract_strided_slice %31 {offsets = [0, 4, 0], sizes = [2, 8, 120], strides = [1, 1, 1]} : vector<2x12x120xbf16> to vector<2x8x120xbf16>
    %37 = tpu.concatenate %32, %33, %34, %35, %36 in 2 : vector<2x8x120xbf16>, vector<2x8x120xbf16>, vector<2x8x120xbf16>, vector<2x8x120xbf16>, vector<2x8x120xbf16> -> vector<2x8x600xbf16>
    %38 = vector.shape_cast %37 : vector<2x8x600xbf16> to vector<16x600xbf16>
    %c0_15 = arith.constant 0 : index
    %c0_16 = arith.constant 0 : index
    %39 = vector.load %arg6[%c0_15, %c0_16] : memref<600x80xbf16, #tpu.memory_space<vmem>>, vector<600x80xbf16>
    %cst_17 = arith.constant dense<0.000000e+00> : vector<16x80xf32>
    %40 = tpu.matmul %38, %39, %cst_17 {dimension_numbers = #tpu.dot_dimension_numbers<[1], [0], [0], [1], [0, 0, 1, 1], [], []>} : vector<16x600xbf16>, vector<600x80xbf16>, vector<16x80xf32> -> vector<16x80xf32>
    %c0_18 = arith.constant 0 : index
    %c0_19 = arith.constant 0 : index
    %41 = vector.load %arg7[%c0_18, %c0_19] : memref<600x80xbf16, #tpu.memory_space<vmem>>, vector<600x80xbf16>
    %cst_20 = arith.constant dense<0.000000e+00> : vector<16x80xf32>
    %42 = tpu.matmul %38, %41, %cst_20 {dimension_numbers = #tpu.dot_dimension_numbers<[1], [0], [0], [1], [0, 0, 1, 1], [], []>} : vector<16x600xbf16>, vector<600x80xbf16>, vector<16x80xf32> -> vector<16x80xf32>
    %43 = arith.maximumf %40, %42 : vector<16x80xf32>
    %44 = vector.shape_cast %43 : vector<16x80xf32> to vector<2x8x80xf32>
    %45 = vector.shape_cast %44 : vector<2x8x80xf32> to vector<2x4x2x80xf32>
    %cst_21 = arith.constant dense<0xFF800000> : vector<2x4x80xf32>
    %46 = vector.multi_reduction <maximumf>, %45, %cst_21 [2] : vector<2x4x2x80xf32> to vector<2x4x80xf32>
    %c0_22 = arith.constant 0 : index
    %c0_23 = arith.constant 0 : index
    %47 = vector.load %arg8[%c0_22, %c0_23] : memref<1x80xf32, #tpu.memory_space<vmem>>, vector<1x80xf32>
    %48 = vector.shape_cast %47 : vector<1x80xf32> to vector<1x1x80xf32>
    %49 = vector.broadcast %48 : vector<1x1x80xf32> to vector<2x4x80xf32>
    %50 = arith.addf %46, %49 : vector<2x4x80xf32>
    %cst_24 = arith.constant 0.000000e+00 : f32
    %51 = vector.broadcast %cst_24 : f32 to vector<2x4x80xf32>
    %52 = arith.maximumf %50, %51 : vector<2x4x80xf32>
    %53 = vector.shape_cast %52 : vector<2x4x80xf32> to vector<2x320xf32>
    %54 = arith.truncf %53 : vector<2x320xf32> to vector<2x320xbf16>
    %c0_25 = arith.constant 0 : index
    %c0_26 = arith.constant 0 : index
    %55 = vector.load %arg9[%c0_25, %c0_26] : memref<320x50xbf16, #tpu.memory_space<vmem>>, vector<320x50xbf16>
    %cst_27 = arith.constant dense<0.000000e+00> : vector<2x50xf32>
    %56 = tpu.matmul %54, %55, %cst_27 {dimension_numbers = #tpu.dot_dimension_numbers<[1], [0], [0], [1], [0, 0, 1, 1], [], []>} : vector<2x320xbf16>, vector<320x50xbf16>, vector<2x50xf32> -> vector<2x50xf32>
    %c0_28 = arith.constant 0 : index
    %c0_29 = arith.constant 0 : index
    %57 = vector.load %arg10[%c0_28, %c0_29] : memref<1x50xf32, #tpu.memory_space<vmem>>, vector<1x50xf32>
    %58 = vector.broadcast %57 : vector<1x50xf32> to vector<2x50xf32>
    %59 = arith.addf %56, %58 : vector<2x50xf32>
    %cst_30 = arith.constant 0.000000e+00 : f32
    %60 = vector.broadcast %cst_30 : f32 to vector<2x50xf32>
    %61 = arith.maximumf %59, %60 : vector<2x50xf32>
    %62 = arith.truncf %61 : vector<2x50xf32> to vector<2x50xbf16>
    %c0_31 = arith.constant 0 : index
    %c0_32 = arith.constant 0 : index
    %63 = vector.load %arg11[%c0_31, %c0_32] : memref<50x128xbf16, #tpu.memory_space<vmem>>, vector<50x128xbf16>
    %cst_33 = arith.constant dense<0.000000e+00> : vector<2x128xf32>
    %64 = tpu.matmul %62, %63, %cst_33 {dimension_numbers = #tpu.dot_dimension_numbers<[1], [0], [0], [1], [0, 0, 1, 1], [], []>} : vector<2x50xbf16>, vector<50x128xbf16>, vector<2x128xf32> -> vector<2x128xf32>
    %c0_34 = arith.constant 0 : index
    %c0_35 = arith.constant 0 : index
    %65 = vector.load %arg12[%c0_34, %c0_35] : memref<1x128xf32, #tpu.memory_space<vmem>>, vector<1x128xf32>
    %66 = vector.broadcast %65 : vector<1x128xf32> to vector<2x128xf32>
    %67 = arith.addf %64, %66 : vector<2x128xf32>
    %cst_36 = arith.constant dense<0xFF800000> : vector<2xf32>
    %68 = vector.multi_reduction <maximumf>, %67, %cst_36 [1] : vector<2x128xf32> to vector<2xf32>
    %69 = vector.shape_cast %68 : vector<2xf32> to vector<2x1xf32>
    %70 = vector.broadcast %69 : vector<2x1xf32> to vector<2x128xf32>
    %71 = arith.subf %67, %70 : vector<2x128xf32>
    %72 = math.exp %71 : vector<2x128xf32>
    %cst_37 = arith.constant dense<0.000000e+00> : vector<2xf32>
    %73 = vector.multi_reduction <add>, %72, %cst_37 [1] : vector<2x128xf32> to vector<2xf32>
    %74 = vector.shape_cast %73 : vector<2xf32> to vector<2x1xf32>
    %75 = math.log %74 : vector<2x1xf32>
    %76 = arith.addf %69, %75 : vector<2x1xf32>
    %77 = vector.broadcast %76 : vector<2x1xf32> to vector<2x128xf32>
    %78 = arith.subf %67, %77 : vector<2x128xf32>
    %c0_38 = arith.constant 0 : index
    %c0_39 = arith.constant 0 : index
    %79 = vector.load %arg13[%c0_38, %c0_39] : memref<2x128xf32, #tpu.memory_space<vmem>>, vector<2x128xf32>
    tpu.vector_store %arg13[%c0_38, %c0_39], %78 {strides = array<i32>} : memref<2x128xf32, #tpu.memory_space<vmem>>, vector<2x128xf32>,
    return
  }
  func.func @transform_0(%arg0: i32) -> (i32, i32, i32) {
    %c0_i32 = arith.constant 0 : i32
    %c0_i32_0 = arith.constant 0 : i32
    %c0_i32_1 = arith.constant 0 : i32
    return %arg0, %c0_i32, %c0_i32_0 : i32, i32, i32
  }
  func.func @transform_1(%arg0: i32) -> (i32, i32, i32) {
    %c0_i32 = arith.constant 0 : i32
    %c0_i32_0 = arith.constant 0 : i32
    %c0_i32_1 = arith.constant 0 : i32
    return %arg0, %c0_i32, %c0_i32_0 : i32, i32, i32
  }
  func.func @transform_2(%arg0: i32) -> (i32, i32) {
    %c0_i32 = arith.constant 0 : i32
    %c0_i32_0 = arith.constant 0 : i32
    %c0_i32_1 = arith.constant 0 : i32
    return %c0_i32, %c0_i32_0 : i32, i32
  }
  func.func @transform_3(%arg0: i32) -> (i32, i32) {
    %c0_i32 = arith.constant 0 : i32
    %c0_i32_0 = arith.constant 0 : i32
    %c0_i32_1 = arith.constant 0 : i32
    return %c0_i32, %c0_i32_0 : i32, i32
  }
  func.func @transform_4(%arg0: i32) -> (i32, i32) {
    %c0_i32 = arith.constant 0 : i32
    %c0_i32_0 = arith.constant 0 : i32
    %c0_i32_1 = arith.constant 0 : i32
    return %c0_i32, %c0_i32_0 : i32, i32
  }
  func.func @transform_5(%arg0: i32) -> (i32, i32) {
    %c0_i32 = arith.constant 0 : i32
    %c0_i32_0 = arith.constant 0 : i32
    %c0_i32_1 = arith.constant 0 : i32
    return %c0_i32, %c0_i32_0 : i32, i32
  }
  func.func @transform_6(%arg0: i32) -> (i32, i32) {
    %c0_i32 = arith.constant 0 : i32
    %c0_i32_0 = arith.constant 0 : i32
    %c0_i32_1 = arith.constant 0 : i32
    return %c0_i32, %c0_i32_0 : i32, i32
  }
  func.func @transform_7(%arg0: i32) -> (i32, i32) {
    %c0_i32 = arith.constant 0 : i32
    %c0_i32_0 = arith.constant 0 : i32
    %c0_i32_1 = arith.constant 0 : i32
    return %c0_i32, %c0_i32_0 : i32, i32
  }
  func.func @transform_8(%arg0: i32) -> (i32, i32) {
    %c0_i32 = arith.constant 0 : i32
    %c0_i32_0 = arith.constant 0 : i32
    %c0_i32_1 = arith.constant 0 : i32
    return %c0_i32, %c0_i32_0 : i32, i32
  }
  func.func @transform_9(%arg0: i32) -> (i32, i32) {
    %c0_i32 = arith.constant 0 : i32
    %c0_i32_0 = arith.constant 0 : i32
    %c0_i32_1 = arith.constant 0 : i32
    return %c0_i32, %c0_i32_0 : i32, i32
  }
  func.func @transform_10(%arg0: i32) -> (i32, i32) {
    %c0_i32 = arith.constant 0 : i32
    %c0_i32_0 = arith.constant 0 : i32
    %c0_i32_1 = arith.constant 0 : i32
    return %c0_i32, %c0_i32_0 : i32, i32
  }
  func.func @transform_11(%arg0: i32) -> (i32, i32) {
    %c0_i32 = arith.constant 0 : i32
    %c0_i32_0 = arith.constant 0 : i32
    %c0_i32_1 = arith.constant 0 : i32
    return %c0_i32, %c0_i32_0 : i32, i32
  }
  func.func @transform_12(%arg0: i32) -> (i32, i32) {
    %c0_i32 = arith.constant 0 : i32
    %c0_i32_0 = arith.constant 0 : i32
    return %arg0, %c0_i32 : i32, i32
  }
}

</mosaic_0001>

<llo_original>
// kernel: tile.13
$region0: #{tile.13}
  #allocation0 [shape = 's32[1]{0}', space=sflag, size = 0x4, scoped, tag = 'scoped memory for tile.13']
  %s0 = inlined_call_operand.vmem [shape: f32[10], index: 0, kind: input, shape index: {}]
  %s1 = inlined_call_operand.vmem [shape: f32[12,10], index: 1, kind: output, shape index: {}]
  // Predicated region
  $region2: #{tile.13} parent=0 // pred_check
    _
  $region3: #{tile.13} parent=0 // pred_check_branch
    %3 = sbr.rel (0) target = $region5
  $region4: #{tile.13} parent=0 // pred_region
    _
  $region5: #{tile.13} parent=0 // pred_fallthru
    _
  %v4 = vld [vmem:[%s0] ss:$0 sm:$0xff]
  %5 = vst [vmem:[%s1] sm:$0xff] %v4
  %s6 = scalar_lea.vmem %s1, 8
  %7 = vst [vmem:[%s6] sm:$0xff] %v4

// kernel: tile.14
$region0: #{tile.14}
  %s0 = inlined_call_operand.vmem [shape: f32[12,10], index: 0, kind: input, shape index: {}]
  %s1 = inlined_call_operand.vmem [shape: f32[1,120], index: 1, kind: output, shape index: {}]
  $region1: #{tile.14} parent=0
    #allocation0 [shape = 'u8[4096]{0}', space=vmem, size = 0x1000, scoped, tag = 'scoped mem for output reshape']
    %v2 = vld [vmem:[%s0] sm:$0x1]
    %vm3 = vcmask 80896
    %4 = vst.msk [vmem:[#allocation0] sm:$0x1] %vm3, %v2
    %s5 = scalar_lea.vmem %s0, 11
    %v6 = vld [vmem:[%s5] sm:$0x1]
    %7 = vrot.lane.b32.xlu0 %v6, 110
    %v8 = vpop.permute.xlu0 %7
    %vm9 = vcmask 982896
    %10 = vst.msk [vmem:[#allocation0] sm:$0x1] %vm9, %v8
    %s11 = scalar_lea.vmem %s0, 10
    %v12 = vld [vmem:[%s11] sm:$0x1]
    %13 = vrot.lane.b32.xlu0 %v12, 100
    %v14 = vpop.permute.xlu0 %13
    %vm15 = vcmask 900896
    %16 = vst.msk [vmem:[#allocation0] sm:$0x1] %vm15, %v14
    %s17 = scalar_lea.vmem %s0, 9
    %v18 = vld [vmem:[%s17] sm:$0x1]
    %19 = vrot.lane.b32.xlu0 %v18, 90
    %v20 = vpop.permute.xlu0 %19
    %vm21 = vcmask 818896
    %22 = vst.msk [vmem:[#allocation0] sm:$0x1] %vm21, %v20
    %s23 = scalar_lea.vmem %s0, 8
    %v24 = vld [vmem:[%s23] sm:$0x1]
    %25 = vrot.lane.b32.xlu0 %v24, 80
    %v26 = vpop.permute.xlu0 %25
    %vm27 = vcmask 736896
    %28 = vst.msk [vmem:[#allocation0] sm:$0x1] %vm27, %v26
    %s29 = scalar_lea.vmem %s0, 7
    %v30 = vld [vmem:[%s29] sm:$0x1]
    %31 = vrot.lane.b32.xlu0 %v30, 70
    %v32 = vpop.permute.xlu0 %31
    %vm33 = vcmask 654896
    %34 = vst.msk [vmem:[#allocation0] sm:$0x1] %vm33, %v32
    %s35 = scalar_lea.vmem %s0, 6
    %v36 = vld [vmem:[%s35] sm:$0x1]
    %37 = vrot.lane.b32.xlu0 %v36, 60
    %v38 = vpop.permute.xlu0 %37
    %vm39 = vcmask 572896
    %40 = vst.msk [vmem:[#allocation0] sm:$0x1] %vm39, %v38
    %s41 = scalar_lea.vmem %s0, 5
    %v42 = vld [vmem:[%s41] sm:$0x1]
    %43 = vrot.lane.b32.xlu0 %v42, 50
    %v44 = vpop.permute.xlu0 %43
    %vm45 = vcmask 490896
    %46 = vst.msk [vmem:[#allocation0] sm:$0x1] %vm45, %v44
    %s47 = scalar_lea.vmem %s0, 4
    %v48 = vld [vmem:[%s47] sm:$0x1]
    %49 = vrot.lane.b32.xlu0 %v48, 40
    %v50 = vpop.permute.xlu0 %49
    %vm51 = vcmask 408896
    %52 = vst.msk [vmem:[#allocation0] sm:$0x1] %vm51, %v50
    %s53 = scalar_lea.vmem %s0, 3
    %v54 = vld [vmem:[%s53] sm:$0x1]
    %55 = vrot.lane.b32.xlu0 %v54, 30
    %v56 = vpop.permute.xlu0 %55
    %vm57 = vcmask 326896
    %58 = vst.msk [vmem:[#allocation0] sm:$0x1] %vm57, %v56
    %s59 = scalar_lea.vmem %s0, 2
    %v60 = vld [vmem:[%s59] sm:$0x1]
    %61 = vrot.lane.b32.xlu0 %v60, 20
    %v62 = vpop.permute.xlu0 %61
    %vm63 = vcmask 244896
    %64 = vst.msk [vmem:[#allocation0] sm:$0x1] %vm63, %v62
    %s65 = scalar_lea.vmem %s0, 1
    %v66 = vld [vmem:[%s65] sm:$0x1]
    %67 = vrot.lane.b32.xlu0 %v66, 10
    %v68 = vpop.permute.xlu0 %67
    %vm69 = vcmask 162896
    %70 = vst.msk [vmem:[#allocation0] sm:$0x1] %vm69, %v68
    %s72 = sshllo.u32 0, 1
    %v74 = vld [vmem:[#allocation0] sm:%s72]
    %s75 = sshllo.u32 0, 1
    %76 = vst [vmem:[%s1] sm:%s75] %v74

// kernel: tile.18
$region0: #{tile.18}
  #allocation0 [shape = 's32[1]{0}', space=sflag, size = 0x4, scoped, tag = 'scoped memory for tile.18']
  %s0 = inlined_call_operand.vmem [shape: f32[20], index: 0, kind: input, shape index: {}]
  %s1 = inlined_call_operand.vmem [shape: f32[4,20], index: 1, kind: output, shape index: {}]
  // Predicated region
  $region2: #{tile.18} parent=0 // pred_check
    _
  $region3: #{tile.18} parent=0 // pred_check_branch
    %3 = sbr.rel (0) target = $region5
  $region4: #{tile.18} parent=0 // pred_region
    _
  $region5: #{tile.18} parent=0 // pred_fallthru
    _
  %v4 = vld [vmem:[%s0] ss:$0 sm:$0xff]
  %5 = vst [vmem:[%s1] sm:$0xf] %v4

// kernel: tile.19
$region0: #{tile.19}
  %s0 = inlined_call_operand.vmem [shape: f32[4,20], index: 0, kind: input, shape index: {}]
  %s1 = inlined_call_operand.vmem [shape: f32[1,80], index: 1, kind: output, shape index: {}]
  $region1: #{tile.19} parent=0
    #allocation0 [shape = 'u8[4096]{0}', space=vmem, size = 0x1000, scoped, tag = 'scoped mem for output reshape']
    #allocation1 [shape = 'u8[4096]{0}', space=vmem, size = 0x1000, scoped, tag = 'scoped mem for input reshape']
    %s3 = sshllo.u32 0, 4
    %v4 = vld [vmem:[%s0] sm:%s3]
    %5 = vst [vmem:[#allocation1] sm:%s3] %v4
    %v6 = vld [vmem:[#allocation1] sm:$0x1]
    %vm7 = vcmask 162816
    %8 = vst.msk [vmem:[#allocation0] sm:$0x1] %vm7, %v6
    %s9 = scalar_lea.vmem [#allocation1], 3
    %v10 = vld [vmem:[%s9] sm:$0x1]
    %11 = vrot.lane.b32.xlu0 %v10, 60
    %v12 = vpop.permute.xlu0 %11
    %vm13 = vcmask 654816
    %14 = vst.msk [vmem:[#allocation0] sm:$0x1] %vm13, %v12
    %s15 = scalar_lea.vmem [#allocation1], 2
    %v16 = vld [vmem:[%s15] sm:$0x1]
    %17 = vrot.lane.b32.xlu0 %v16, 40
    %v18 = vpop.permute.xlu0 %17
    %vm19 = vcmask 490816
    %20 = vst.msk [vmem:[#allocation0] sm:$0x1] %vm19, %v18
    %s21 = scalar_lea.vmem [#allocation1], 1
    %v22 = vld [vmem:[%s21] sm:$0x1]
    %23 = vrot.lane.b32.xlu0 %v22, 20
    %v24 = vpop.permute.xlu0 %23
    %vm25 = vcmask 326816
    %26 = vst.msk [vmem:[#allocation0] sm:$0x1] %vm25, %v24
    %s28 = sshllo.u32 0, 1
    %v30 = vld [vmem:[#allocation0] sm:%s28]
    %s31 = sshllo.u32 0, 1
    %32 = vst [vmem:[%s1] sm:%s31] %v30

// kernel: _lambda_.1
$region0: #{_lambda_.1}
  #allocation0 [shape = 'u32[]', space=smem, size = 0x4, offset = 0x4, fixed_abs, tag = 'smem constant byte address 0x4 - core index']
  #allocation1 [shape = 'u32[144,128]{1,0:T(1,128)}', space=vmem, size = 0x12000, scoped, tag = 'internal scratch']
  %s0 = inlined_call_operand.vmem [shape: bf16[2,14,28], index: 0, kind: input, shape index: {}]
  %s1 = inlined_call_operand.vmem [shape: bf16[2,14,28], index: 1, kind: input, shape index: {}]
  %s2 = inlined_call_operand.vmem [shape: bf16[140,120], index: 2, kind: input, shape index: {}]
  %s3 = inlined_call_operand.vmem [shape: bf16[140,120], index: 3, kind: input, shape index: {}]
  %s4 = inlined_call_operand.vmem [shape: f32[1,120], index: 4, kind: input, shape index: {}]
  %s5 = inlined_call_operand.vmem [shape: bf16[600,80], index: 5, kind: input, shape index: {}]
  %s6 = inlined_call_operand.vmem [shape: bf16[600,80], index: 6, kind: input, shape index: {}]
  %s7 = inlined_call_operand.vmem [shape: f32[1,80], index: 7, kind: input, shape index: {}]
  %s8 = inlined_call_operand.vmem [shape: bf16[320,50], index: 8, kind: input, shape index: {}]
  %s9 = inlined_call_operand.vmem [shape: f32[1,50], index: 9, kind: input, shape index: {}]
  %s10 = inlined_call_operand.vmem [shape: bf16[50,128], index: 10, kind: input, shape index: {}]
  %s11 = inlined_call_operand.vmem [shape: f32[1,128], index: 11, kind: input, shape index: {}]
  %s12 = inlined_call_operand.hbm [shape: f32[2,128], index: 12, kind: output, shape index: {}]
  %s13 = sld [smem:[#allocation0]]
  $region58: #{_lambda_.1} parent=0
    _
  %s15 = ssub.s32 1, %s13
  %s16 = scalar_select 0, %s15, %s13
  $region1: #{_lambda_.1} parent=0
    #allocation2 [shape = 'u8[1024]{0}', space=vmem, size = 0x400, scoped, tag = 'output window, operand 0, single buffered']
    #allocation3 [shape = 's32[1]{0}', space=sflag, size = 0x4, scoped, tag = 'scoped memory for _lambda_.1']
    %17 = vsyncpa [#allocation3], 0
    // Predicated region
    $region2: #{_lambda_.1} parent=1 // pred_check
      _
    $region3: #{_lambda_.1} parent=1 // pred_check_branch
      %19 = sbr.rel (0) target = $region5
    $region4: #{_lambda_.1} parent=1 // pred_region
      _
    $region5: #{_lambda_.1} parent=1 // pred_fallthru
      _
    // Predicated region
    $region6: #{_lambda_.1} parent=1 // pred_check
      _
    $region7: #{_lambda_.1} parent=1 // pred_check_branch
      %21 = sbr.rel (0) target = $region9
    $region8: #{_lambda_.1} parent=1 // pred_region
      _
    $region9: #{_lambda_.1} parent=1 // pred_fallthru
      _
    // Predicated region
    $region10: #{_lambda_.1} parent=1 // pred_check
      _
    $region11: #{_lambda_.1} parent=1 // pred_check_branch
      %23 = sbr.rel (0) target = $region13
    $region12: #{_lambda_.1} parent=1 // pred_region
      _
    $region13: #{_lambda_.1} parent=1 // pred_fallthru
      _
    // Predicated region
    $region14: #{_lambda_.1} parent=1 // pred_check
      _
    $region15: #{_lambda_.1} parent=1 // pred_check_branch
      %25 = sbr.rel (0) target = $region17
    $region16: #{_lambda_.1} parent=1 // pred_region
      _
    $region17: #{_lambda_.1} parent=1 // pred_fallthru
      _
    // Predicated region
    $region18: #{_lambda_.1} parent=1 // pred_check
      _
    $region19: #{_lambda_.1} parent=1 // pred_check_branch
      %27 = sbr.rel (0) target = $region21
    $region20: #{_lambda_.1} parent=1 // pred_region
      _
    $region21: #{_lambda_.1} parent=1 // pred_fallthru
      _
    // Predicated region
    $region22: #{_lambda_.1} parent=1 // pred_check
      _
    $region23: #{_lambda_.1} parent=1 // pred_check_branch
      %29 = sbr.rel (0) target = $region25
    $region24: #{_lambda_.1} parent=1 // pred_region
      _
    $region25: #{_lambda_.1} parent=1 // pred_fallthru
      _
    // Predicated region
    $region26: #{_lambda_.1} parent=1 // pred_check
      _
    $region27: #{_lambda_.1} parent=1 // pred_check_branch
      %31 = sbr.rel (0) target = $region29
    $region28: #{_lambda_.1} parent=1 // pred_region
      _
    $region29: #{_lambda_.1} parent=1 // pred_fallthru
      _
    // Predicated region
    $region30: #{_lambda_.1} parent=1 // pred_check
      _
    $region31: #{_lambda_.1} parent=1 // pred_check_branch
      %33 = sbr.rel (0) target = $region33
    $region32: #{_lambda_.1} parent=1 // pred_region
      _
    $region33: #{_lambda_.1} parent=1 // pred_fallthru
      _
    // Predicated region
    $region34: #{_lambda_.1} parent=1 // pred_check
      _
    $region35: #{_lambda_.1} parent=1 // pred_check_branch
      %35 = sbr.rel (0) target = $region37
    $region36: #{_lambda_.1} parent=1 // pred_region
      _
    $region37: #{_lambda_.1} parent=1 // pred_fallthru
      _
    // Predicated region
    $region38: #{_lambda_.1} parent=1 // pred_check
      _
    $region39: #{_lambda_.1} parent=1 // pred_check_branch
      %37 = sbr.rel (0) target = $region41
    $region40: #{_lambda_.1} parent=1 // pred_region
      _
    $region41: #{_lambda_.1} parent=1 // pred_fallthru
      _
    // Predicated region
    $region42: #{_lambda_.1} parent=1 // pred_check
      _
    $region43: #{_lambda_.1} parent=1 // pred_check_branch
      %39 = sbr.rel (0) target = $region45
    $region44: #{_lambda_.1} parent=1 // pred_region
      _
    $region45: #{_lambda_.1} parent=1 // pred_fallthru
      _
    // Predicated region
    $region46: #{_lambda_.1} parent=1 // pred_check
      _
    $region47: #{_lambda_.1} parent=1 // pred_check_branch
      %41 = sbr.rel (0) target = $region49
    $region48: #{_lambda_.1} parent=1 // pred_region
      _
    $region49: #{_lambda_.1} parent=1 // pred_fallthru
      _
    %v43 = vld [vmem:[%s0] sm:$0xf]
    %v44 = vld [vmem:[%s0 + $0x4] sm:$0x7]
    %v45 = vld [vmem:[%s0 + $0x8] sm:$0xf]
    %v46 = vld [vmem:[%s0 + $0xc] sm:$0x7]
    %v47 = vld [vmem:[%s1] sm:$0xf]
    %v48 = vld [vmem:[%s1 + $0x4] sm:$0x7]
    %v49 = vld [vmem:[%s1 + $0x8] sm:$0xf]
    %v50 = vld [vmem:[%s1 + $0xc] sm:$0x7]
    %v55 = vunpack.c.l.b16 %v43
    %v56 = vunpack.c.l.b16 %v44
    %v57 = vunpack.c.l.b16 %v45
    %v58 = vunpack.c.l.b16 %v46
    %v59 = vpack.c.b16 %v56, %v55
    %v60 = vpack.c.b16 %v58, %v57
    %v65 = vunpack.c.l.b16 %v47
    %v66 = vunpack.c.l.b16 %v48
    %v67 = vunpack.c.l.b16 %v49
    %v68 = vunpack.c.l.b16 %v50
    %v69 = vpack.c.b16 %v66, %v65
    %v70 = vpack.c.b16 %v68, %v67
    %71 = vrot.lane.b32.xlu0 %v69, 28
    %v72 = vpop.permute.xlu0 %71
    %73 = vrot.lane.b32.xlu0 %v70, 28
    %v74 = vpop.permute.xlu0 %73
    %v76 = vshrl.u32 %v59, 16
    %v78 = vshll.u32 %v59, 16
    %v80 = vrot.slane %v78, 1
    %v81 = vor.u32 %v76, %v80
    %v83 = vshrl.u32 %v60, 16
    %v85 = vshll.u32 %v60, 16
    %v87 = vrot.slane %v85, 1
    %v88 = vor.u32 %v83, %v87
    %89 = vrot.lane.b32.xlu0 %v81, 56
    %v90 = vpop.permute.xlu0 %89
    %91 = vrot.lane.b32.xlu0 %v88, 56
    %v92 = vpop.permute.xlu0 %91
    %v94 = vshrl.u32 %v69, 16
    %v96 = vshll.u32 %v69, 16
    %v98 = vrot.slane %v96, 1
    %v99 = vor.u32 %v94, %v98
    %v101 = vshrl.u32 %v70, 16
    %v103 = vshll.u32 %v70, 16
    %v105 = vrot.slane %v103, 1
    %v106 = vor.u32 %v101, %v105
    %107 = vrot.lane.b32.xlu0 %v99, 84
    %v108 = vpop.permute.xlu0 %107
    %109 = vrot.lane.b32.xlu0 %v106, 84
    %v110 = vpop.permute.xlu0 %109
    %v111 = vrot.slane %v59, 1
    %v112 = vrot.slane %v60, 1
    %113 = vrot.lane.b32.xlu0 %v111, 112
    %v114 = vpop.permute.xlu0 %113
    %115 = vrot.lane.b32.xlu0 %v112, 112
    %v116 = vpop.permute.xlu0 %115
    %vm117 = vcmask 228352
    %v119 = vsel %vm117, %v59, %v72
    %v121 = vsel %vm117, %v60, %v74
    %vm122 = vcmask 457728
    %v124 = vsel %vm122, %v119, %v90
    %v126 = vsel %vm122, %v121, %v92
    %vm127 = vcmask 687104
    %v129 = vsel %vm127, %v124, %v108
    %v131 = vsel %vm127, %v126, %v110
    %vm132 = vcmask 916480
    %v134 = vsel %vm132, %v129, %v114
    %v136 = vsel %vm132, %v131, %v116
    %v139 = vcombine.low %v134, %v114
    %v140 = vcombine.high %v134, %v114
    %v142 = vunpack.c.l.s4 1983009808
    %v143 = vunpack.c.0.s8 %v142
    %v144 = vlaneseq
    %v145 = vshrl.u32 %v144, 7
    %v146 = vsub.s32 %v143, %v145
    %v147 = vrot.slane %v139, %v146
    %v149 = vunpack.c.l.s4 1983009808
    %v150 = vunpack.c.0.s8 %v149
    %v151 = vlaneseq
    %v152 = vshrl.u32 %v151, 7
    %v153 = vsub.s32 %v150, %v152
    %v154 = vrot.slane %v140, %v153
    %v155 = vcombine.high %v147, %v147
    %v156 = vcombine.low %v136, %v116
    %v157 = vcombine.high %v136, %v116
    %v159 = vunpack.c.l.s4 1983009808
    %v160 = vunpack.c.0.s8 %v159
    %v161 = vlaneseq
    %v162 = vshrl.u32 %v161, 7
    %v163 = vsub.s32 %v160, %v162
    %v164 = vrot.slane %v156, %v163
    %v166 = vunpack.c.l.s4 1983009808
    %v167 = vunpack.c.0.s8 %v166
    %v168 = vlaneseq
    %v169 = vshrl.u32 %v168, 7
    %v170 = vsub.s32 %v167, %v169
    %v171 = vrot.slane %v157, %v170
    %v172 = vcombine.high %v164, %v164
    %173 = vrot.lane.b32.xlu0 %v81, 28
    %v174 = vpop.permute.xlu0 %173
    %175 = vrot.lane.b32.xlu0 %v88, 28
    %v176 = vpop.permute.xlu0 %175
    %177 = vrot.lane.b32.xlu0 %v99, 56
    %v178 = vpop.permute.xlu0 %177
    %179 = vrot.lane.b32.xlu0 %v106, 56
    %v180 = vpop.permute.xlu0 %179
    %181 = vrot.lane.b32.xlu0 %v111, 84
    %v182 = vpop.permute.xlu0 %181
    %183 = vrot.lane.b32.xlu0 %v112, 84
    %v184 = vpop.permute.xlu0 %183
    %v185 = vrot.slane %v69, 1
    %v186 = vrot.slane %v70, 1
    %187 = vrot.lane.b32.xlu0 %v185, 112
    %v188 = vpop.permute.xlu0 %187
    %189 = vrot.lane.b32.xlu0 %v186, 112
    %v190 = vpop.permute.xlu0 %189
    %v192 = vsel %vm117, %v69, %v174
    %v194 = vsel %vm117, %v70, %v176
    %v196 = vsel %vm122, %v192, %v178
    %v198 = vsel %vm122, %v194, %v180
    %v200 = vsel %vm127, %v196, %v182
    %v202 = vsel %vm127, %v198, %v184
    %v204 = vsel %vm132, %v200, %v188
    %v206 = vsel %vm132, %v202, %v190
    %v209 = vcombine.low %v204, %v188
    %v210 = vcombine.high %v204, %v188
    %v212 = vunpack.c.l.s4 1983009808
    %v213 = vunpack.c.0.s8 %v212
    %v214 = vlaneseq
    %v215 = vshrl.u32 %v214, 7
    %v216 = vsub.s32 %v213, %v215
    %v217 = vrot.slane %v209, %v216
    %v219 = vunpack.c.l.s4 1983009808
    %v220 = vunpack.c.0.s8 %v219
    %v221 = vlaneseq
    %v222 = vshrl.u32 %v221, 7
    %v223 = vsub.s32 %v220, %v222
    %v224 = vrot.slane %v210, %v223
    %v225 = vcombine.high %v217, %v217
    %v226 = vcombine.low %v206, %v190
    %v227 = vcombine.high %v206, %v190
    %v229 = vunpack.c.l.s4 1983009808
    %v230 = vunpack.c.0.s8 %v229
    %v231 = vlaneseq
    %v232 = vshrl.u32 %v231, 7
    %v233 = vsub.s32 %v230, %v232
    %v234 = vrot.slane %v226, %v233
    %v236 = vunpack.c.l.s4 1983009808
    %v237 = vunpack.c.0.s8 %v236
    %v238 = vlaneseq
    %v239 = vshrl.u32 %v238, 7
    %v240 = vsub.s32 %v237, %v239
    %v241 = vrot.slane %v227, %v240
    %v242 = vcombine.high %v234, %v234
    %v243 = vld [vmem:[%s2] sm:$0xf]
    %v244 = vld [vmem:[%s2 + $0x4] sm:$0xf]
    %v245 = vld [vmem:[%s2 + $0x8] sm:$0xf]
    %v246 = vld [vmem:[%s2 + $0xc] sm:$0xf]
    %v247 = vld [vmem:[%s2 + $0x10] sm:$0xf]
    %v248 = vld [vmem:[%s2 + $0x14] sm:$0xf]
    %v249 = vld [vmem:[%s2 + $0x18] sm:$0xf]
    %v250 = vld [vmem:[%s2 + $0x1c] sm:$0xf]
    %v251 = vld [vmem:[%s2 + $0x20] sm:$0xf]
    %v252 = vld [vmem:[%s2 + $0x24] sm:$0xf]
    %v253 = vld [vmem:[%s2 + $0x28] sm:$0xf]
    %v254 = vld [vmem:[%s2 + $0x2c] sm:$0xf]
    %v255 = vld [vmem:[%s2 + $0x30] sm:$0xf]
    %v256 = vld [vmem:[%s2 + $0x34] sm:$0xf]
    %v257 = vld [vmem:[%s2 + $0x38] sm:$0xf]
    %v258 = vld [vmem:[%s2 + $0x3c] sm:$0xf]
    %v259 = vld [vmem:[%s2 + $0x40] sm:$0xf]
    %v260 = vld [vmem:[%s2 + $0x44] sm:$0x3]
    %v261 = vld [vmem:[%s3] sm:$0xf]
    %v262 = vld [vmem:[%s3 + $0x4] sm:$0xf]
    %v263 = vld [vmem:[%s3 + $0x8] sm:$0xf]
    %v264 = vld [vmem:[%s3 + $0xc] sm:$0xf]
    %v265 = vld [vmem:[%s3 + $0x10] sm:$0xf]
    %v266 = vld [vmem:[%s3 + $0x14] sm:$0xf]
    %v267 = vld [vmem:[%s3 + $0x18] sm:$0xf]
    %v268 = vld [vmem:[%s3 + $0x1c] sm:$0xf]
    %v269 = vld [vmem:[%s3 + $0x20] sm:$0xf]
    %v270 = vld [vmem:[%s3 + $0x24] sm:$0xf]
    %v271 = vld [vmem:[%s3 + $0x28] sm:$0xf]
    %v272 = vld [vmem:[%s3 + $0x2c] sm:$0xf]
    %v273 = vld [vmem:[%s3 + $0x30] sm:$0xf]
    %v274 = vld [vmem:[%s3 + $0x34] sm:$0xf]
    %v275 = vld [vmem:[%s3 + $0x38] sm:$0xf]
    %v276 = vld [vmem:[%s3 + $0x3c] sm:$0xf]
    %v277 = vld [vmem:[%s3 + $0x40] sm:$0xf]
    %v278 = vld [vmem:[%s3 + $0x44] sm:$0x3]
    %v279 = vcombine.low %v147, %v155
    %v280 = vcombine.low %v154, %v164
    %v282 = vunpack.c.l.s4 1983009808
    %v283 = vunpack.c.0.s8 %v282
    %v284 = vlaneseq
    %v285 = vshrl.u32 %v284, 7
    %v286 = vsub.s32 %v283, %v285
    %v287 = vrot.slane %v279, %v286
    %v289 = vunpack.c.l.s4 1983009808
    %v290 = vunpack.c.0.s8 %v289
    %v291 = vlaneseq
    %v292 = vshrl.u32 %v291, 7
    %v293 = vsub.s32 %v290, %v292
    %v294 = vrot.slane %v280, %v293
    %v295 = vcombine.low %v287, %v294
    %v296 = vcombine.high %v287, %v294
    %v297 = vcombine.low %v172, %v171
    %v299 = vunpack.c.l.s4 1983009808
    %v300 = vunpack.c.0.s8 %v299
    %v301 = vlaneseq
    %v302 = vshrl.u32 %v301, 7
    %v303 = vsub.s32 %v300, %v302
    %v304 = vrot.slane %v297, %v303
    %v305 = vcombine.high %v304, %v304
    %v326 = vunpack.c.l.b16 %v243
    %v327 = vunpack.c.l.b16 %v244
    %v328 = vunpack.c.l.b16 %v245
    %v329 = vunpack.c.l.b16 %v246
    %v330 = vunpack.c.l.b16 %v247
    %v331 = vunpack.c.l.b16 %v248
    %v332 = vunpack.c.l.b16 %v249
    %v333 = vunpack.c.l.b16 %v250
    %v334 = vunpack.c.l.b16 %v251
    %v335 = vunpack.c.l.b16 %v252
    %v336 = vunpack.c.l.b16 %v253
    %v337 = vunpack.c.l.b16 %v254
    %v338 = vunpack.c.l.b16 %v255
    %v339 = vunpack.c.l.b16 %v256
    %v340 = vunpack.c.l.b16 %v257
    %v341 = vunpack.c.l.b16 %v258
    %v342 = vunpack.c.l.b16 %v259
    %v343 = vunpack.c.l.b16 %v260
    %v344 = vpack.c.b16 %v327, %v326
    %v345 = vpack.c.b16 %v329, %v328
    %v346 = vpack.c.b16 %v331, %v330
    %v347 = vpack.c.b16 %v333, %v332
    %v348 = vpack.c.b16 %v335, %v334
    %v349 = vpack.c.b16 %v337, %v336
    %v350 = vpack.c.b16 %v339, %v338
    %v351 = vpack.c.b16 %v341, %v340
    %v352 = vpack.c.b16 %v343, %v342
    %vm361 = vcmask 97280
    %v363 = vsel %vm361, %v296, 0
    %v366 = vsel %vm361, %v305, 0
    %vm368 = vcmask 1045504
    %v370 = vsel %vm368, %v352, 0
    %372 = vmatprep.subr.bf16.mxu0 0
    %373 = vmatpush1.bf16.msra.mxu0 %v344
    %374 = vmatprep.subr.bf16.mxu0 0
    %375 = vmatpush1.bf16.msra.mxu0 %v345
    %376 = vmatprep.subr.bf16.mxu0 0
    %377 = vmatpush1.bf16.msra.mxu0 %v346
    %378 = vmatprep.subr.bf16.mxu0 0
    %379 = vmatpush1.bf16.msra.mxu0 %v347
    %380 = vmatprep.subr.bf16.mxu0 0
    %381 = vmatpush1.bf16.msra.mxu0 %v348
    %382 = vmatprep.subr.bf16.mxu0 0
    %383 = vmatpush1.bf16.msra.mxu0 %v349
    %384 = vmatprep.subr.bf16.mxu0 0
    %385 = vmatpush1.bf16.msra.mxu0 %v350
    %386 = vmatprep.subr.bf16.mxu0 0
    %387 = vmatpush1.bf16.msra.mxu0 %v351
    %388 = vmatprep.subr.bf16.mxu0 0
    %389 = vmatpush1.bf16.msra.mxu0 %v370
    %390 = vmatprep.subr.bf16.mxu0 0
    %391 = vmatpush1.bf16.msra.mxu0 0
    %392 = vmatprep.subr.bf16.mxu0 0
    %393 = vmatpush1.bf16.msra.mxu0 0
    %394 = vmatprep.subr.bf16.mxu0 0
    %395 = vmatpush1.bf16.msra.mxu0 0
    %396 = vmatprep.subr.bf16.mxu0 0
    %397 = vmatpush1.bf16.msra.mxu0 0
    %398 = vmatprep.subr.bf16.mxu0 0
    %399 = vmatpush1.bf16.msra.mxu0 0
    %400 = vmatprep.subr.bf16.mxu0 0
    %401 = vmatpush1.bf16.msra.mxu0 0
    %402 = vmatprep.subr.bf16.mxu0 0
    %403 = vmatpush1.bf16.msra.mxu0 0
    %404 = vmatprep.mubr.bf16.mxu0 %v363
    %405 = vmatmul.mubr.bf16.gmra.mrb[0].mxu0 %v295
    %v406 = vpop.f32.mrb[0].mxu0
    %v407 = vadd.f32 0.0, %v406
    %v408 = vpop.f32.mrb[0].mxu0
    %v409 = vpop.f32.mrb[0].mxu0
    %v410 = vadd.f32 0.0, %v409
    %v411 = vpop.f32.mrb[0].mxu0
    %412 = vmatprep.mubr.bf16.mxu0 %v366
    %413 = vmatmul.mubr.bf16.gmra.mrb[0].mxu0 %v304
    %v414 = vpop.f32.mrb[0].mxu0
    %v415 = vadd.f32 0.0, %v414
    %v416 = vpop.f32.mrb[0].mxu0
    %v417 = vpop.f32.mrb[0].mxu0
    %v418 = vpop.f32.mrb[0].mxu0
    %419 = vdwg.mxu0
    %v438 = vunpack.c.l.b16 %v261
    %v439 = vunpack.c.l.b16 %v262
    %v440 = vunpack.c.l.b16 %v263
    %v441 = vunpack.c.l.b16 %v264
    %v442 = vunpack.c.l.b16 %v265
    %v443 = vunpack.c.l.b16 %v266
    %v444 = vunpack.c.l.b16 %v267
    %v445 = vunpack.c.l.b16 %v268
    %v446 = vunpack.c.l.b16 %v269
    %v447 = vunpack.c.l.b16 %v270
    %v448 = vunpack.c.l.b16 %v271
    %v449 = vunpack.c.l.b16 %v272
    %v450 = vunpack.c.l.b16 %v273
    %v451 = vunpack.c.l.b16 %v274
    %v452 = vunpack.c.l.b16 %v275
    %v453 = vunpack.c.l.b16 %v276
    %v454 = vunpack.c.l.b16 %v277
    %v455 = vunpack.c.l.b16 %v278
    %v456 = vpack.c.b16 %v439, %v438
    %v457 = vpack.c.b16 %v441, %v440
    %v458 = vpack.c.b16 %v443, %v442
    %v459 = vpack.c.b16 %v445, %v444
    %v460 = vpack.c.b16 %v447, %v446
    %v461 = vpack.c.b16 %v449, %v448
    %v462 = vpack.c.b16 %v451, %v450
    %v463 = vpack.c.b16 %v453, %v452
    %v464 = vpack.c.b16 %v455, %v454
    %v474 = vsel %vm368, %v464, 0
    %476 = vmatprep.subr.bf16.mxu0 0
    %477 = vmatpush1.bf16.msra.mxu0 %v456
    %478 = vmatprep.subr.bf16.mxu0 0
    %479 = vmatpush1.bf16.msra.mxu0 %v457
    %480 = vmatprep.subr.bf16.mxu0 0
    %481 = vmatpush1.bf16.msra.mxu0 %v458
    %482 = vmatprep.subr.bf16.mxu0 0
    %483 = vmatpush1.bf16.msra.mxu0 %v459
    %484 = vmatprep.subr.bf16.mxu0 0
    %485 = vmatpush1.bf16.msra.mxu0 %v460
    %486 = vmatprep.subr.bf16.mxu0 0
    %487 = vmatpush1.bf16.msra.mxu0 %v461
    %488 = vmatprep.subr.bf16.mxu0 0
    %489 = vmatpush1.bf16.msra.mxu0 %v462
    %490 = vmatprep.subr.bf16.mxu0 0
    %491 = vmatpush1.bf16.msra.mxu0 %v463
    %492 = vmatprep.subr.bf16.mxu0 0
    %493 = vmatpush1.bf16.msra.mxu0 %v474
    %494 = vmatprep.subr.bf16.mxu0 0
    %495 = vmatpush1.bf16.msra.mxu0 0
    %496 = vmatprep.subr.bf16.mxu0 0
    %497 = vmatpush1.bf16.msra.mxu0 0
    %498 = vmatprep.subr.bf16.mxu0 0
    %499 = vmatpush1.bf16.msra.mxu0 0
    %500 = vmatprep.subr.bf16.mxu0 0
    %501 = vmatpush1.bf16.msra.mxu0 0
    %502 = vmatprep.subr.bf16.mxu0 0
    %503 = vmatpush1.bf16.msra.mxu0 0
    %504 = vmatprep.subr.bf16.mxu0 0
    %505 = vmatpush1.bf16.msra.mxu0 0
    %506 = vmatprep.subr.bf16.mxu0 0
    %507 = vmatpush1.bf16.msra.mxu0 0
    %508 = vmatprep.mubr.bf16.mxu0 %v363
    %509 = vmatmul.mubr.bf16.gmra.mrb[0].mxu0 %v295
    %v510 = vpop.f32.mrb[0].mxu0
    %v511 = vadd.f32 0.0, %v510
    %v512 = vpop.f32.mrb[0].mxu0
    %v513 = vpop.f32.mrb[0].mxu0
    %v514 = vadd.f32 0.0, %v513
    %v515 = vpop.f32.mrb[0].mxu0
    %516 = vmatprep.mubr.bf16.mxu0 %v366
    %517 = vmatmul.mubr.bf16.gmra.mrb[0].mxu0 %v304
    %v518 = vpop.f32.mrb[0].mxu0
    %v519 = vadd.f32 0.0, %v518
    %v520 = vpop.f32.mrb[0].mxu0
    %v521 = vpop.f32.mrb[0].mxu0
    %v522 = vpop.f32.mrb[0].mxu0
    %523 = vdwg.mxu0
    %v524 = vcombine.low %v217, %v225
    %v525 = vcombine.low %v224, %v234
    %v527 = vunpack.c.l.s4 1983009808
    %v528 = vunpack.c.0.s8 %v527
    %v529 = vlaneseq
    %v530 = vshrl.u32 %v529, 7
    %v531 = vsub.s32 %v528, %v530
    %v532 = vrot.slane %v524, %v531
    %v534 = vunpack.c.l.s4 1983009808
    %v535 = vunpack.c.0.s8 %v534
    %v536 = vlaneseq
    %v537 = vshrl.u32 %v536, 7
    %v538 = vsub.s32 %v535, %v537
    %v539 = vrot.slane %v525, %v538
    %v540 = vcombine.low %v532, %v539
    %v541 = vcombine.high %v532, %v539
    %v542 = vcombine.low %v242, %v241
    %v544 = vunpack.c.l.s4 1983009808
    %v545 = vunpack.c.0.s8 %v544
    %v546 = vlaneseq
    %v547 = vshrl.u32 %v546, 7
    %v548 = vsub.s32 %v545, %v547
    %v549 = vrot.slane %v542, %v548
    %v550 = vcombine.high %v549, %v549
    %v554 = vsel %vm361, %v541, 0
    %v557 = vsel %vm361, %v550, 0
    %559 = vmatprep.subr.bf16.mxu0 0
    %560 = vmatpush1.bf16.msra.mxu0 %v344
    %561 = vmatprep.subr.bf16.mxu0 0
    %562 = vmatpush1.bf16.msra.mxu0 %v345
    %563 = vmatprep.subr.bf16.mxu0 0
    %564 = vmatpush1.bf16.msra.mxu0 %v346
    %565 = vmatprep.subr.bf16.mxu0 0
    %566 = vmatpush1.bf16.msra.mxu0 %v347
    %567 = vmatprep.subr.bf16.mxu0 0
    %568 = vmatpush1.bf16.msra.mxu0 %v348
    %569 = vmatprep.subr.bf16.mxu0 0
    %570 = vmatpush1.bf16.msra.mxu0 %v349
    %571 = vmatprep.subr.bf16.mxu0 0
    %572 = vmatpush1.bf16.msra.mxu0 %v350
    %573 = vmatprep.subr.bf16.mxu0 0
    %574 = vmatpush1.bf16.msra.mxu0 %v351
    %575 = vmatprep.subr.bf16.mxu0 0
    %576 = vmatpush1.bf16.msra.mxu0 %v370
    %577 = vmatprep.subr.bf16.mxu0 0
    %578 = vmatpush1.bf16.msra.mxu0 0
    %579 = vmatprep.subr.bf16.mxu0 0
    %580 = vmatpush1.bf16.msra.mxu0 0
    %581 = vmatprep.subr.bf16.mxu0 0
    %582 = vmatpush1.bf16.msra.mxu0 0
    %583 = vmatprep.subr.bf16.mxu0 0
    %584 = vmatpush1.bf16.msra.mxu0 0
    %585 = vmatprep.subr.bf16.mxu0 0
    %586 = vmatpush1.bf16.msra.mxu0 0
    %587 = vmatprep.subr.bf16.mxu0 0
    %588 = vmatpush1.bf16.msra.mxu0 0
    %589 = vmatprep.subr.bf16.mxu0 0
    %590 = vmatpush1.bf16.msra.mxu0 0
    %591 = vmatprep.mubr.bf16.mxu0 %v554
    %592 = vmatmul.mubr.bf16.gmra.mrb[0].mxu0 %v540
    %v593 = vpop.f32.mrb[0].mxu0
    %v594 = vadd.f32 0.0, %v593
    %v595 = vpop.f32.mrb[0].mxu0
    %v596 = vpop.f32.mrb[0].mxu0
    %v597 = vadd.f32 0.0, %v596
    %v598 = vpop.f32.mrb[0].mxu0
    %599 = vmatprep.mubr.bf16.mxu0 %v557
    %600 = vmatmul.mubr.bf16.gmra.mrb[0].mxu0 %v549
    %v601 = vpop.f32.mrb[0].mxu0
    %v602 = vadd.f32 0.0, %v601
    %v603 = vpop.f32.mrb[0].mxu0
    %v604 = vpop.f32.mrb[0].mxu0
    %v605 = vpop.f32.mrb[0].mxu0
    %606 = vdwg.mxu0
    %607 = vmatprep.subr.bf16.mxu0 0
    %608 = vmatpush1.bf16.msra.mxu0 %v456
    %609 = vmatprep.subr.bf16.mxu0 0
    %610 = vmatpush1.bf16.msra.mxu0 %v457
    %611 = vmatprep.subr.bf16.mxu0 0
    %612 = vmatpush1.bf16.msra.mxu0 %v458
    %613 = vmatprep.subr.bf16.mxu0 0
    %614 = vmatpush1.bf16.msra.mxu0 %v459
    %615 = vmatprep.subr.bf16.mxu0 0
    %616 = vmatpush1.bf16.msra.mxu0 %v460
    %617 = vmatprep.subr.bf16.mxu0 0
    %618 = vmatpush1.bf16.msra.mxu0 %v461
    %619 = vmatprep.subr.bf16.mxu0 0
    %620 = vmatpush1.bf16.msra.mxu0 %v462
    %621 = vmatprep.subr.bf16.mxu0 0
    %622 = vmatpush1.bf16.msra.mxu0 %v463
    %623 = vmatprep.subr.bf16.mxu0 0
    %624 = vmatpush1.bf16.msra.mxu0 %v474
    %625 = vmatprep.subr.bf16.mxu0 0
    %626 = vmatpush1.bf16.msra.mxu0 0
    %627 = vmatprep.subr.bf16.mxu0 0
    %628 = vmatpush1.bf16.msra.mxu0 0
    %629 = vmatprep.subr.bf16.mxu0 0
    %630 = vmatpush1.bf16.msra.mxu0 0
    %631 = vmatprep.subr.bf16.mxu0 0
    %632 = vmatpush1.bf16.msra.mxu0 0
    %633 = vmatprep.subr.bf16.mxu0 0
    %634 = vmatpush1.bf16.msra.mxu0 0
    %635 = vmatprep.subr.bf16.mxu0 0
    %636 = vmatpush1.bf16.msra.mxu0 0
    %637 = vmatprep.subr.bf16.mxu0 0
    %638 = vmatpush1.bf16.msra.mxu0 0
    %639 = vmatprep.mubr.bf16.mxu0 %v554
    %640 = vmatmul.mubr.bf16.gmra.mrb[0].mxu0 %v540
    %v641 = vpop.f32.mrb[0].mxu0
    %v642 = vadd.f32 0.0, %v641
    %v643 = vpop.f32.mrb[0].mxu0
    %v644 = vpop.f32.mrb[0].mxu0
    %v645 = vadd.f32 0.0, %v644
    %v646 = vpop.f32.mrb[0].mxu0
    %647 = vmatprep.mubr.bf16.mxu0 %v557
    %648 = vmatmul.mubr.bf16.gmra.mrb[0].mxu0 %v549
    %v649 = vpop.f32.mrb[0].mxu0
    %v650 = vadd.f32 0.0, %v649
    %v651 = vpop.f32.mrb[0].mxu0
    %v652 = vpop.f32.mrb[0].mxu0
    %v653 = vpop.f32.mrb[0].mxu0
    %654 = vdwg.mxu0
    %v655 = vmax.f32 %v407, %v511
    %v656 = vmax.f32 %v410, %v514
    %v657 = vmax.f32 %v415, %v519
    %v658 = vmax.f32 %v594, %v642
    %v659 = vmax.f32 %v597, %v645
    %v660 = vmax.f32 %v602, %v650
    %v661 = vmax.f32 %v655, %v658
    %v662 = vmax.f32 %v656, %v659
    %v663 = vmax.f32 %v657, %v660
    %v664 = vld [vmem:[%s4] sm:$0x1]
    %v666 = vlaneseq
    %v667 = vshrl.u32 %v666, 7
    %v668 = vsub.s32 0, %v667
    %v669 = vrot.slane %v664, %v668
    %v671 = vadd.f32 %v661, %v669
    %v672 = vadd.f32 %v662, %v669
    %v673 = vadd.f32 %v663, %v669
    %v674 = vmax.f32 %v671, 0.0
    %v675 = vmax.f32 %v672, 0.0
    %v676 = vmax.f32 %v673, 0.0
    %v677 = vpack.c.bf16 %v675, %v674
    %v678 = vpack.c.bf16 %v676, %v676
    %v681 = vcombine.high %v677, %v677
    %v683 = vunpack.c.l.s4 1983009808
    %v684 = vunpack.c.0.s8 %v683
    %v685 = vlaneseq
    %v686 = vshrl.u32 %v685, 7
    %v687 = vsub.s32 %v684, %v686
    %v688 = vrot.slane %v677, %v687
    %v690 = vunpack.c.l.s4 1983009808
    %v691 = vunpack.c.0.s8 %v690
    %v692 = vlaneseq
    %v693 = vshrl.u32 %v692, 7
    %v694 = vsub.s32 %v691, %v693
    %v695 = vrot.slane %v681, %v694
    %v696 = vcombine.high %v688, %v688
    %v697 = vcombine.high %v695, %v695
    %v699 = vunpack.c.l.s4 1983009808
    %v700 = vunpack.c.0.s8 %v699
    %v701 = vlaneseq
    %v702 = vshrl.u32 %v701, 7
    %v703 = vsub.s32 %v700, %v702
    %v704 = vrot.slane %v678, %v703
    %v705 = vcombine.high %v704, %v704
    %v706 = vcombine.low %v688, %v696
    %v708 = vunpack.c.l.s4 1983009808
    %v709 = vunpack.c.0.s8 %v708
    %v710 = vlaneseq
    %v711 = vshrl.u32 %v710, 7
    %v712 = vsub.s32 %v709, %v711
    %v713 = vrot.slane %v706, %v712
    %v714 = vcombine.low %v697, %v704
    %v716 = vunpack.c.l.s4 1983009808
    %v717 = vunpack.c.0.s8 %v716
    %v718 = vlaneseq
    %v719 = vshrl.u32 %v718, 7
    %v720 = vsub.s32 %v717, %v719
    %v721 = vrot.slane %v714, %v720
    %v723 = vunpack.c.l.s4 1983009808
    %v724 = vunpack.c.0.s8 %v723
    %v725 = vlaneseq
    %v726 = vshrl.u32 %v725, 7
    %v727 = vsub.s32 %v724, %v726
    %v728 = vrot.slane %v695, %v727
    %v729 = vcombine.low %v713, %v728
    %v731 = vunpack.c.l.s4 1983009808
    %v732 = vunpack.c.0.s8 %v731
    %v733 = vlaneseq
    %v734 = vshrl.u32 %v733, 7
    %v735 = vsub.s32 %v732, %v734
    %v736 = vrot.slane %v705, %v735
    %v737 = vcombine.low %v721, %v736
    %v739 = vshrl.u32 %v729, 16
    %v741 = vshll.u32 %v729, 16
    %v743 = vrot.slane %v741, 1
    %v744 = vor.u32 %v739, %v743
    %v746 = vshrl.u32 %v737, 16
    %v748 = vshll.u32 %v737, 16
    %v750 = vrot.slane %v748, 1
    %v751 = vor.u32 %v746, %v750
    %752 = vrot.lane.b32.xlu0 %v744, 120
    %v753 = vpop.permute.xlu0 %752
    %754 = vrot.lane.b32.xlu0 %v751, 120
    %v755 = vpop.permute.xlu0 %754
    %v756 = vrot.slane %v729, 1
    %v757 = vrot.slane %v737, 1
    %758 = vrot.lane.b32.xlu0 %v756, 112
    %v759 = vpop.permute.xlu0 %758
    %760 = vrot.lane.b32.xlu0 %v757, 112
    %v761 = vpop.permute.xlu0 %760
    %v762 = vrot.slane %v739, 1
    %v763 = vrot.slane %v741, 2
    %v764 = vor.u32 %v762, %v763
    %v765 = vrot.slane %v746, 1
    %v766 = vrot.slane %v748, 2
    %v767 = vor.u32 %v765, %v766
    %768 = vrot.lane.b32.xlu0 %v764, 104
    %v769 = vpop.permute.xlu0 %768
    %770 = vrot.lane.b32.xlu0 %v767, 104
    %v771 = vpop.permute.xlu0 %770
    %v772 = vcombine.low %v696, %v695
    %v774 = vunpack.c.l.s4 1983009808
    %v775 = vunpack.c.0.s8 %v774
    %v776 = vlaneseq
    %v777 = vshrl.u32 %v776, 7
    %v778 = vsub.s32 %v775, %v777
    %v779 = vrot.slane %v772, %v778
    %v780 = vcombine.low %v704, %v705
    %v782 = vunpack.c.l.s4 1983009808
    %v783 = vunpack.c.0.s8 %v782
    %v784 = vlaneseq
    %v785 = vshrl.u32 %v784, 7
    %v786 = vsub.s32 %v783, %v785
    %v787 = vrot.slane %v780, %v786
    %788 = vrot.lane.b32.xlu0 %v779, 96
    %v789 = vpop.permute.xlu0 %788
    %790 = vrot.lane.b32.xlu0 %v787, 96
    %v791 = vpop.permute.xlu0 %790
    %vm792 = vcmask 982016
    %v795 = vsel %vm792, %v713, %v753
    %v798 = vsel %vm792, %v721, %v755
    %v800 = vsel %vm132, %v753, %v759
    %v802 = vsel %vm132, %v755, %v761
    %vm803 = vcmask 850944
    %v805 = vsel %vm803, %v759, %v769
    %v807 = vsel %vm803, %v761, %v771
    %vm808 = vcmask 785408
    %v810 = vsel %vm808, %v769, %v789
    %v812 = vsel %vm808, %v771, %v791
    %v821 = vunpack.c.l.b16 %v795
    %v822 = vunpack.c.l.b16 %v800
    %v823 = vunpack.c.l.b16 %v805
    %v824 = vunpack.c.l.b16 %v810
    %v825 = vunpack.c.l.b16 %v789
    %v826 = vunpack.c.l.b16 %v798
    %v827 = vunpack.c.l.b16 %v802
    %v828 = vunpack.c.l.b16 %v807
    %v829 = vunpack.c.l.b16 %v812
    %v830 = vunpack.c.l.b16 %v791
    %v831 = vld [vmem:[%s5] sm:$0xf]
    %v832 = vld [vmem:[%s5 + $0x4] sm:$0xf]
    %v833 = vld [vmem:[%s5 + $0x8] sm:$0xf]
    %v834 = vld [vmem:[%s5 + $0xc] sm:$0xf]
    %v835 = vld [vmem:[%s5 + $0x10] sm:$0xf]
    %v836 = vld [vmem:[%s5 + $0x14] sm:$0xf]
    %v837 = vld [vmem:[%s5 + $0x18] sm:$0xf]
    %v838 = vld [vmem:[%s5 + $0x1c] sm:$0xf]
    %v839 = vld [vmem:[%s5 + $0x20] sm:$0xf]
    %v840 = vld [vmem:[%s5 + $0x24] sm:$0xf]
    %v841 = vld [vmem:[%s5 + $0x28] sm:$0xf]
    %v842 = vld [vmem:[%s5 + $0x2c] sm:$0xf]
    %v843 = vld [vmem:[%s5 + $0x30] sm:$0xf]
    %v844 = vld [vmem:[%s5 + $0x34] sm:$0xf]
    %v845 = vld [vmem:[%s5 + $0x38] sm:$0xf]
    %v846 = vld [vmem:[%s5 + $0x3c] sm:$0xf]
    %v847 = vld [vmem:[%s5 + $0x40] sm:$0xf]
    %v848 = vld [vmem:[%s5 + $0x44] sm:$0xf]
    %v849 = vld [vmem:[%s5 + $0x48] sm:$0xf]
    %v850 = vld [vmem:[%s5 + $0x4c] sm:$0xf]
    %v851 = vld [vmem:[%s5 + $0x50] sm:$0xf]
    %v852 = vld [vmem:[%s5 + $0x54] sm:$0xf]
    %v853 = vld [vmem:[%s5 + $0x58] sm:$0xf]
    %v854 = vld [vmem:[%s5 + $0x5c] sm:$0xf]
    %v855 = vld [vmem:[%s5 + $0x60] sm:$0xf]
    %v856 = vld [vmem:[%s5 + $0x64] sm:$0xf]
    %v857 = vld [vmem:[%s5 + $0x68] sm:$0xf]
    %v858 = vld [vmem:[%s5 + $0x6c] sm:$0xf]
    %v859 = vld [vmem:[%s5 + $0x70] sm:$0xf]
    %v860 = vld [vmem:[%s5 + $0x74] sm:$0xf]
    %v861 = vld [vmem:[%s5 + $0x78] sm:$0xf]
    %v862 = vld [vmem:[%s5 + $0x7c] sm:$0xf]
    %v863 = vld [vmem:[%s5 + $0x80] sm:$0xf]
    %v864 = vld [vmem:[%s5 + $0x84] sm:$0xf]
    %v865 = vld [vmem:[%s5 + $0x88] sm:$0xf]
    %v866 = vld [vmem:[%s5 + $0x8c] sm:$0xf]
    %v867 = vld [vmem:[%s5 + $0x90] sm:$0xf]
    %v868 = vld [vmem:[%s5 + $0x94] sm:$0xf]
    %v869 = vld [vmem:[%s5 + $0x98] sm:$0xf]
    %v870 = vld [vmem:[%s5 + $0x9c] sm:$0xf]
    %v871 = vld [vmem:[%s5 + $0xa0] sm:$0xf]
    %v872 = vld [vmem:[%s5 + $0xa4] sm:$0xf]
    %v873 = vld [vmem:[%s5 + $0xa8] sm:$0xf]
    %v874 = vld [vmem:[%s5 + $0xac] sm:$0xf]
    %v875 = vld [vmem:[%s5 + $0xb0] sm:$0xf]
    %v876 = vld [vmem:[%s5 + $0xb4] sm:$0xf]
    %v877 = vld [vmem:[%s5 + $0xb8] sm:$0xf]
    %v878 = vld [vmem:[%s5 + $0xbc] sm:$0xf]
    %v879 = vld [vmem:[%s5 + $0xc0] sm:$0xf]
    %v880 = vld [vmem:[%s5 + $0xc4] sm:$0xf]
    %v881 = vld [vmem:[%s5 + $0xc8] sm:$0xf]
    %v882 = vld [vmem:[%s5 + $0xcc] sm:$0xf]
    %v883 = vld [vmem:[%s5 + $0xd0] sm:$0xf]
    %v884 = vld [vmem:[%s5 + $0xd4] sm:$0xf]
    %v885 = vld [vmem:[%s5 + $0xd8] sm:$0xf]
    %v886 = vld [vmem:[%s5 + $0xdc] sm:$0xf]
    %v887 = vld [vmem:[%s5 + $0xe0] sm:$0xf]
    %v888 = vld [vmem:[%s5 + $0xe4] sm:$0xf]
    %v889 = vld [vmem:[%s5 + $0xe8] sm:$0xf]
    %v890 = vld [vmem:[%s5 + $0xec] sm:$0xf]
    %v891 = vld [vmem:[%s5 + $0xf0] sm:$0xf]
    %v892 = vld [vmem:[%s5 + $0xf4] sm:$0xf]
    %v893 = vld [vmem:[%s5 + $0xf8] sm:$0xf]
    %v894 = vld [vmem:[%s5 + $0xfc] sm:$0xf]
    %v895 = vld [vmem:[%s5 + $0x100] sm:$0xf]
    %v896 = vld [vmem:[%s5 + $0x104] sm:$0xf]
    %v897 = vld [vmem:[%s5 + $0x108] sm:$0xf]
    %v898 = vld [vmem:[%s5 + $0x10c] sm:$0xf]
    %v899 = vld [vmem:[%s5 + $0x110] sm:$0xf]
    %v900 = vld [vmem:[%s5 + $0x114] sm:$0xf]
    %v901 = vld [vmem:[%s5 + $0x118] sm:$0xf]
    %v902 = vld [vmem:[%s5 + $0x11c] sm:$0xf]
    %v903 = vld [vmem:[%s5 + $0x120] sm:$0xf]
    %v904 = vld [vmem:[%s5 + $0x124] sm:$0xf]
    %v905 = vld [vmem:[%s5 + $0x128] sm:$0xf]
    %v906 = vpack.c.b16 %v826, %v821
    %v907 = vpack.c.b16 %v827, %v822
    %v908 = vpack.c.b16 %v828, %v823
    %v909 = vpack.c.b16 %v829, %v824
    %v910 = vpack.c.b16 %v830, %v825
    %v990 = vunpack.c.l.b16 %v831
    %v991 = vunpack.c.l.b16 %v832
    %v992 = vunpack.c.l.b16 %v833
    %v993 = vunpack.c.l.b16 %v834
    %v994 = vunpack.c.l.b16 %v835
    %v995 = vunpack.c.l.b16 %v836
    %v996 = vunpack.c.l.b16 %v837
    %v997 = vunpack.c.l.b16 %v838
    %v998 = vunpack.c.l.b16 %v839
    %v999 = vunpack.c.l.b16 %v840
    %v1000 = vunpack.c.l.b16 %v841
    %v1001 = vunpack.c.l.b16 %v842
    %v1002 = vunpack.c.l.b16 %v843
    %v1003 = vunpack.c.l.b16 %v844
    %v1004 = vunpack.c.l.b16 %v845
    %v1005 = vunpack.c.l.b16 %v846
    %v1006 = vunpack.c.l.b16 %v847
    %v1007 = vunpack.c.l.b16 %v848
    %v1008 = vunpack.c.l.b16 %v849
    %v1009 = vunpack.c.l.b16 %v850
    %v1010 = vunpack.c.l.b16 %v851
    %v1011 = vunpack.c.l.b16 %v852
    %v1012 = vunpack.c.l.b16 %v853
    %v1013 = vunpack.c.l.b16 %v854
    %v1014 = vunpack.c.l.b16 %v855
    %v1015 = vunpack.c.l.b16 %v856
    %v1016 = vunpack.c.l.b16 %v857
    %v1017 = vunpack.c.l.b16 %v858
    %v1018 = vunpack.c.l.b16 %v859
    %v1019 = vunpack.c.l.b16 %v860
    %v1020 = vunpack.c.l.b16 %v861
    %v1021 = vunpack.c.l.b16 %v862
    %v1022 = vunpack.c.l.b16 %v863
    %v1023 = vunpack.c.l.b16 %v864
    %v1024 = vunpack.c.l.b16 %v865
    %v1025 = vunpack.c.l.b16 %v866
    %v1026 = vunpack.c.l.b16 %v867
    %v1027 = vunpack.c.l.b16 %v868
    %v1028 = vunpack.c.l.b16 %v869
    %v1029 = vunpack.c.l.b16 %v870
    %v1030 = vunpack.c.l.b16 %v871
    %v1031 = vunpack.c.l.b16 %v872
    %v1032 = vunpack.c.l.b16 %v873
    %v1033 = vunpack.c.l.b16 %v874
    %v1034 = vunpack.c.l.b16 %v875
    %v1035 = vunpack.c.l.b16 %v876
    %v1036 = vunpack.c.l.b16 %v877
    %v1037 = vunpack.c.l.b16 %v878
    %v1038 = vunpack.c.l.b16 %v879
    %v1039 = vunpack.c.l.b16 %v880
    %v1040 = vunpack.c.l.b16 %v881
    %v1041 = vunpack.c.l.b16 %v882
    %v1042 = vunpack.c.l.b16 %v883
    %v1043 = vunpack.c.l.b16 %v884
    %v1044 = vunpack.c.l.b16 %v885
    %v1045 = vunpack.c.l.b16 %v886
    %v1046 = vunpack.c.l.b16 %v887
    %v1047 = vunpack.c.l.b16 %v888
    %v1048 = vunpack.c.l.b16 %v889
    %v1049 = vunpack.c.l.b16 %v890
    %v1050 = vunpack.c.l.b16 %v891
    %v1051 = vunpack.c.l.b16 %v892
    %v1052 = vunpack.c.l.b16 %v893
    %v1053 = vunpack.c.l.b16 %v894
    %v1054 = vunpack.c.l.b16 %v895
    %v1055 = vunpack.c.l.b16 %v896
    %v1056 = vunpack.c.l.b16 %v897
    %v1057 = vunpack.c.l.b16 %v898
    %v1058 = vunpack.c.l.b16 %v899
    %v1059 = vunpack.c.l.b16 %v900
    %v1060 = vunpack.c.l.b16 %v901
    %v1061 = vunpack.c.l.b16 %v902
    %v1062 = vunpack.c.l.b16 %v903
    %v1063 = vunpack.c.l.b16 %v904
    %v1064 = vunpack.c.l.b16 %v905
    %v1065 = vpack.c.b16 %v991, %v990
    %v1066 = vpack.c.b16 %v993, %v992
    %v1067 = vpack.c.b16 %v995, %v994
    %v1068 = vpack.c.b16 %v997, %v996
    %v1069 = vpack.c.b16 %v999, %v998
    %v1070 = vpack.c.b16 %v1001, %v1000
    %v1071 = vpack.c.b16 %v1003, %v1002
    %v1072 = vpack.c.b16 %v1005, %v1004
    %v1073 = vpack.c.b16 %v1007, %v1006
    %v1074 = vpack.c.b16 %v1009, %v1008
    %v1075 = vpack.c.b16 %v1011, %v1010
    %v1076 = vpack.c.b16 %v1013, %v1012
    %v1077 = vpack.c.b16 %v1015, %v1014
    %v1078 = vpack.c.b16 %v1017, %v1016
    %v1079 = vpack.c.b16 %v1019, %v1018
    %v1080 = vpack.c.b16 %v1021, %v1020
    %v1081 = vpack.c.b16 %v1023, %v1022
    %v1082 = vpack.c.b16 %v1025, %v1024
    %v1083 = vpack.c.b16 %v1027, %v1026
    %v1084 = vpack.c.b16 %v1029, %v1028
    %v1085 = vpack.c.b16 %v1031, %v1030
    %v1086 = vpack.c.b16 %v1033, %v1032
    %v1087 = vpack.c.b16 %v1035, %v1034
    %v1088 = vpack.c.b16 %v1037, %v1036
    %v1089 = vpack.c.b16 %v1039, %v1038
    %v1090 = vpack.c.b16 %v1041, %v1040
    %v1091 = vpack.c.b16 %v1043, %v1042
    %v1092 = vpack.c.b16 %v1045, %v1044
    %v1093 = vpack.c.b16 %v1047, %v1046
    %v1094 = vpack.c.b16 %v1049, %v1048
    %v1095 = vpack.c.b16 %v1051, %v1050
    %v1096 = vpack.c.b16 %v1053, %v1052
    %v1097 = vpack.c.b16 %v1055, %v1054
    %v1098 = vpack.c.b16 %v1057, %v1056
    %v1099 = vpack.c.b16 %v1059, %v1058
    %v1100 = vpack.c.b16 %v1061, %v1060
    %v1101 = vpack.c.b16 %v1063, %v1062
    %v1102 = vpack.c.b16 %v1064, %v1064
    %vm1140 = vcmask 719872
    %v1142 = vsel %vm1140, %v910, 0
    %vm1144 = vcmask 1043456
    %v1146 = vsel %vm1144, %v1102, 0
    %1148 = vmatprep.subr.bf16.mxu0 0
    %1149 = vmatpush1.bf16.msra.mxu0 %v1065
    %1150 = vmatprep.subr.bf16.mxu0 0
    %1151 = vmatpush1.bf16.msra.mxu0 %v1066
    %1152 = vmatprep.subr.bf16.mxu0 0
    %1153 = vmatpush1.bf16.msra.mxu0 %v1067
    %1154 = vmatprep.subr.bf16.mxu0 0
    %1155 = vmatpush1.bf16.msra.mxu0 %v1068
    %1156 = vmatprep.subr.bf16.mxu0 0
    %1157 = vmatpush1.bf16.msra.mxu0 %v1069
    %1158 = vmatprep.subr.bf16.mxu0 0
    %1159 = vmatpush1.bf16.msra.mxu0 %v1070
    %1160 = vmatprep.subr.bf16.mxu0 0
    %1161 = vmatpush1.bf16.msra.mxu0 %v1071
    %1162 = vmatprep.subr.bf16.mxu0 0
    %1163 = vmatpush1.bf16.msra.mxu0 %v1072
    %1164 = vmatprep.subr.bf16.mxu0 0
    %1165 = vmatpush1.bf16.msra.mxu0 %v1073
    %1166 = vmatprep.subr.bf16.mxu0 0
    %1167 = vmatpush1.bf16.msra.mxu0 %v1074
    %1168 = vmatprep.subr.bf16.mxu0 0
    %1169 = vmatpush1.bf16.msra.mxu0 %v1075
    %1170 = vmatprep.subr.bf16.mxu0 0
    %1171 = vmatpush1.bf16.msra.mxu0 %v1076
    %1172 = vmatprep.subr.bf16.mxu0 0
    %1173 = vmatpush1.bf16.msra.mxu0 %v1077
    %1174 = vmatprep.subr.bf16.mxu0 0
    %1175 = vmatpush1.bf16.msra.mxu0 %v1078
    %1176 = vmatprep.subr.bf16.mxu0 0
    %1177 = vmatpush1.bf16.msra.mxu0 %v1079
    %1178 = vmatprep.subr.bf16.mxu0 0
    %1179 = vmatpush1.bf16.msra.mxu0 %v1080
    %1180 = vmatprep.mubr.bf16.mxu0 %v907
    %1181 = vmatmul.mubr.bf16.gmra.mrb[0].mxu0 %v906
    %v1182 = vpop.f32.mrb[0].mxu0
    %v1183 = vadd.f32 0.0, %v1182
    %v1184 = vpop.f32.mrb[0].mxu0
    %v1185 = vpop.f32.mrb[0].mxu0
    %v1186 = vadd.f32 0.0, %v1185
    %v1187 = vpop.f32.mrb[0].mxu0
    %1188 = vdwg.mxu0
    %1189 = vmatprep.subr.bf16.mxu0 0
    %1190 = vmatpush1.bf16.msra.mxu0 %v1081
    %1191 = vmatprep.subr.bf16.mxu0 0
    %1192 = vmatpush1.bf16.msra.mxu0 %v1082
    %1193 = vmatprep.subr.bf16.mxu0 0
    %1194 = vmatpush1.bf16.msra.mxu0 %v1083
    %1195 = vmatprep.subr.bf16.mxu0 0
    %1196 = vmatpush1.bf16.msra.mxu0 %v1084
    %1197 = vmatprep.subr.bf16.mxu0 0
    %1198 = vmatpush1.bf16.msra.mxu0 %v1085
    %1199 = vmatprep.subr.bf16.mxu0 0
    %1200 = vmatpush1.bf16.msra.mxu0 %v1086
    %1201 = vmatprep.subr.bf16.mxu0 0
    %1202 = vmatpush1.bf16.msra.mxu0 %v1087
    %1203 = vmatprep.subr.bf16.mxu0 0
    %1204 = vmatpush1.bf16.msra.mxu0 %v1088
    %1205 = vmatprep.subr.bf16.mxu0 0
    %1206 = vmatpush1.bf16.msra.mxu0 %v1089
    %1207 = vmatprep.subr.bf16.mxu0 0
    %1208 = vmatpush1.bf16.msra.mxu0 %v1090
    %1209 = vmatprep.subr.bf16.mxu0 0
    %1210 = vmatpush1.bf16.msra.mxu0 %v1091
    %1211 = vmatprep.subr.bf16.mxu0 0
    %1212 = vmatpush1.bf16.msra.mxu0 %v1092
    %1213 = vmatprep.subr.bf16.mxu0 0
    %1214 = vmatpush1.bf16.msra.mxu0 %v1093
    %1215 = vmatprep.subr.bf16.mxu0 0
    %1216 = vmatpush1.bf16.msra.mxu0 %v1094
    %1217 = vmatprep.subr.bf16.mxu0 0
    %1218 = vmatpush1.bf16.msra.mxu0 %v1095
    %1219 = vmatprep.subr.bf16.mxu0 0
    %1220 = vmatpush1.bf16.msra.mxu0 %v1096
    %1221 = vmatprep.mubr.bf16.mxu0 %v909
    %1222 = vmatmul.mubr.bf16.gmra.mrb[0].mxu0 %v908
    %v1223 = vpop.f32.mrb[0].mxu0
    %v1224 = vadd.f32 %v1183, %v1223
    %v1225 = vpop.f32.mrb[0].mxu0
    %v1226 = vpop.f32.mrb[0].mxu0
    %v1227 = vadd.f32 %v1186, %v1226
    %v1228 = vpop.f32.mrb[0].mxu0
    %1229 = vdwg.mxu0
    %1230 = vmatprep.subr.bf16.mxu0 0
    %1231 = vmatpush1.bf16.msra.mxu0 %v1097
    %1232 = vmatprep.subr.bf16.mxu0 0
    %1233 = vmatpush1.bf16.msra.mxu0 %v1098
    %1234 = vmatprep.subr.bf16.mxu0 0
    %1235 = vmatpush1.bf16.msra.mxu0 %v1099
    %1236 = vmatprep.subr.bf16.mxu0 0
    %1237 = vmatpush1.bf16.msra.mxu0 %v1100
    %1238 = vmatprep.subr.bf16.mxu0 0
    %1239 = vmatpush1.bf16.msra.mxu0 %v1101
    %1240 = vmatprep.subr.bf16.mxu0 0
    %1241 = vmatpush1.bf16.msra.mxu0 %v1146
    %1242 = vmatprep.subr.bf16.mxu0 0
    %1243 = vmatpush1.bf16.msra.mxu0 0
    %1244 = vmatprep.subr.bf16.mxu0 0
    %1245 = vmatpush1.bf16.msra.mxu0 0
    %1246 = vmatprep.subr.bf16.mxu0 0
    %1247 = vmatpush1.bf16.msra.mxu0 0
    %1248 = vmatprep.subr.bf16.mxu0 0
    %1249 = vmatpush1.bf16.msra.mxu0 0
    %1250 = vmatprep.subr.bf16.mxu0 0
    %1251 = vmatpush1.bf16.msra.mxu0 0
    %1252 = vmatprep.subr.bf16.mxu0 0
    %1253 = vmatpush1.bf16.msra.mxu0 0
    %1254 = vmatprep.subr.bf16.mxu0 0
    %1255 = vmatpush1.bf16.msra.mxu0 0
    %1256 = vmatprep.subr.bf16.mxu0 0
    %1257 = vmatpush1.bf16.msra.mxu0 0
    %1258 = vmatprep.subr.bf16.mxu0 0
    %1259 = vmatpush1.bf16.msra.mxu0 0
    %1260 = vmatprep.subr.bf16.mxu0 0
    %1261 = vmatpush1.bf16.msra.mxu0 0
    %1262 = vmatprep.mubr.bf16.mxu0 0
    %1263 = vmatmul.mubr.bf16.gmra.mrb[0].mxu0 %v1142
    %v1264 = vpop.f32.mrb[0].mxu0
    %v1265 = vadd.f32 %v1224, %v1264
    %v1266 = vpop.f32.mrb[0].mxu0
    %v1267 = vpop.f32.mrb[0].mxu0
    %v1268 = vadd.f32 %v1227, %v1267
    %v1269 = vpop.f32.mrb[0].mxu0
    %1270 = vdwg.mxu0
    %v1271 = vld [vmem:[%s6] sm:$0xf]
    %v1272 = vld [vmem:[%s6 + $0x4] sm:$0xf]
    %v1273 = vld [vmem:[%s6 + $0x8] sm:$0xf]
    %v1274 = vld [vmem:[%s6 + $0xc] sm:$0xf]
    %v1275 = vld [vmem:[%s6 + $0x10] sm:$0xf]
    %v1276 = vld [vmem:[%s6 + $0x14] sm:$0xf]
    %v1277 = vld [vmem:[%s6 + $0x18] sm:$0xf]
    %v1278 = vld [vmem:[%s6 + $0x1c] sm:$0xf]
    %v1279 = vld [vmem:[%s6 + $0x20] sm:$0xf]
    %v1280 = vld [vmem:[%s6 + $0x24] sm:$0xf]
    %v1281 = vld [vmem:[%s6 + $0x28] sm:$0xf]
    %v1282 = vld [vmem:[%s6 + $0x2c] sm:$0xf]
    %v1283 = vld [vmem:[%s6 + $0x30] sm:$0xf]
    %v1284 = vld [vmem:[%s6 + $0x34] sm:$0xf]
    %v1285 = vld [vmem:[%s6 + $0x38] sm:$0xf]
    %v1286 = vld [vmem:[%s6 + $0x3c] sm:$0xf]
    %v1287 = vld [vmem:[%s6 + $0x40] sm:$0xf]
    %v1288 = vld [vmem:[%s6 + $0x44] sm:$0xf]
    %v1289 = vld [vmem:[%s6 + $0x48] sm:$0xf]
    %v1290 = vld [vmem:[%s6 + $0x4c] sm:$0xf]
    %v1291 = vld [vmem:[%s6 + $0x50] sm:$0xf]
    %v1292 = vld [vmem:[%s6 + $0x54] sm:$0xf]
    %v1293 = vld [vmem:[%s6 + $0x58] sm:$0xf]
    %v1294 = vld [vmem:[%s6 + $0x5c] sm:$0xf]
    %v1295 = vld [vmem:[%s6 + $0x60] sm:$0xf]
    %v1296 = vld [vmem:[%s6 + $0x64] sm:$0xf]
    %v1297 = vld [vmem:[%s6 + $0x68] sm:$0xf]
    %v1298 = vld [vmem:[%s6 + $0x6c] sm:$0xf]
    %v1299 = vld [vmem:[%s6 + $0x70] sm:$0xf]
    %v1300 = vld [vmem:[%s6 + $0x74] sm:$0xf]
    %v1301 = vld [vmem:[%s6 + $0x78] sm:$0xf]
    %v1302 = vld [vmem:[%s6 + $0x7c] sm:$0xf]
    %v1303 = vld [vmem:[%s6 + $0x80] sm:$0xf]
    %v1304 = vld [vmem:[%s6 + $0x84] sm:$0xf]
    %v1305 = vld [vmem:[%s6 + $0x88] sm:$0xf]
    %v1306 = vld [vmem:[%s6 + $0x8c] sm:$0xf]
    %v1307 = vld [vmem:[%s6 + $0x90] sm:$0xf]
    %v1308 = vld [vmem:[%s6 + $0x94] sm:$0xf]
    %v1309 = vld [vmem:[%s6 + $0x98] sm:$0xf]
    %v1310 = vld [vmem:[%s6 + $0x9c] sm:$0xf]
    %v1311 = vld [vmem:[%s6 + $0xa0] sm:$0xf]
    %v1312 = vld [vmem:[%s6 + $0xa4] sm:$0xf]
    %v1313 = vld [vmem:[%s6 + $0xa8] sm:$0xf]
    %v1314 = vld [vmem:[%s6 + $0xac] sm:$0xf]
    %v1315 = vld [vmem:[%s6 + $0xb0] sm:$0xf]
    %v1316 = vld [vmem:[%s6 + $0xb4] sm:$0xf]
    %v1317 = vld [vmem:[%s6 + $0xb8] sm:$0xf]
    %v1318 = vld [vmem:[%s6 + $0xbc] sm:$0xf]
    %v1319 = vld [vmem:[%s6 + $0xc0] sm:$0xf]
    %v1320 = vld [vmem:[%s6 + $0xc4] sm:$0xf]
    %v1321 = vld [vmem:[%s6 + $0xc8] sm:$0xf]
    %v1322 = vld [vmem:[%s6 + $0xcc] sm:$0xf]
    %v1323 = vld [vmem:[%s6 + $0xd0] sm:$0xf]
    %v1324 = vld [vmem:[%s6 + $0xd4] sm:$0xf]
    %v1325 = vld [vmem:[%s6 + $0xd8] sm:$0xf]
    %v1326 = vld [vmem:[%s6 + $0xdc] sm:$0xf]
    %v1327 = vld [vmem:[%s6 + $0xe0] sm:$0xf]
    %v1328 = vld [vmem:[%s6 + $0xe4] sm:$0xf]
    %v1329 = vld [vmem:[%s6 + $0xe8] sm:$0xf]
    %v1330 = vld [vmem:[%s6 + $0xec] sm:$0xf]
    %v1331 = vld [vmem:[%s6 + $0xf0] sm:$0xf]
    %v1332 = vld [vmem:[%s6 + $0xf4] sm:$0xf]
    %v1333 = vld [vmem:[%s6 + $0xf8] sm:$0xf]
    %v1334 = vld [vmem:[%s6 + $0xfc] sm:$0xf]
    %v1335 = vld [vmem:[%s6 + $0x100] sm:$0xf]
    %v1336 = vld [vmem:[%s6 + $0x104] sm:$0xf]
    %v1337 = vld [vmem:[%s6 + $0x108] sm:$0xf]
    %v1338 = vld [vmem:[%s6 + $0x10c] sm:$0xf]
    %v1339 = vld [vmem:[%s6 + $0x110] sm:$0xf]
    %v1340 = vld [vmem:[%s6 + $0x114] sm:$0xf]
    %v1341 = vld [vmem:[%s6 + $0x118] sm:$0xf]
    %v1342 = vld [vmem:[%s6 + $0x11c] sm:$0xf]
    %v1343 = vld [vmem:[%s6 + $0x120] sm:$0xf]
    %v1344 = vld [vmem:[%s6 + $0x124] sm:$0xf]
    %v1345 = vld [vmem:[%s6 + $0x128] sm:$0xf]
    %v1421 = vunpack.c.l.b16 %v1271
    %v1422 = vunpack.c.l.b16 %v1272
    %v1423 = vunpack.c.l.b16 %v1273
    %v1424 = vunpack.c.l.b16 %v1274
    %v1425 = vunpack.c.l.b16 %v1275
    %v1426 = vunpack.c.l.b16 %v1276
    %v1427 = vunpack.c.l.b16 %v1277
    %v1428 = vunpack.c.l.b16 %v1278
    %v1429 = vunpack.c.l.b16 %v1279
    %v1430 = vunpack.c.l.b16 %v1280
    %v1431 = vunpack.c.l.b16 %v1281
    %v1432 = vunpack.c.l.b16 %v1282
    %v1433 = vunpack.c.l.b16 %v1283
    %v1434 = vunpack.c.l.b16 %v1284
    %v1435 = vunpack.c.l.b16 %v1285
    %v1436 = vunpack.c.l.b16 %v1286
    %v1437 = vunpack.c.l.b16 %v1287
    %v1438 = vunpack.c.l.b16 %v1288
    %v1439 = vunpack.c.l.b16 %v1289
    %v1440 = vunpack.c.l.b16 %v1290
    %v1441 = vunpack.c.l.b16 %v1291
    %v1442 = vunpack.c.l.b16 %v1292
    %v1443 = vunpack.c.l.b16 %v1293
    %v1444 = vunpack.c.l.b16 %v1294
    %v1445 = vunpack.c.l.b16 %v1295
    %v1446 = vunpack.c.l.b16 %v1296
    %v1447 = vunpack.c.l.b16 %v1297
    %v1448 = vunpack.c.l.b16 %v1298
    %v1449 = vunpack.c.l.b16 %v1299
    %v1450 = vunpack.c.l.b16 %v1300
    %v1451 = vunpack.c.l.b16 %v1301
    %v1452 = vunpack.c.l.b16 %v1302
    %v1453 = vunpack.c.l.b16 %v1303
    %v1454 = vunpack.c.l.b16 %v1304
    %v1455 = vunpack.c.l.b16 %v1305
    %v1456 = vunpack.c.l.b16 %v1306
    %v1457 = vunpack.c.l.b16 %v1307
    %v1458 = vunpack.c.l.b16 %v1308
    %v1459 = vunpack.c.l.b16 %v1309
    %v1460 = vunpack.c.l.b16 %v1310
    %v1461 = vunpack.c.l.b16 %v1311
    %v1462 = vunpack.c.l.b16 %v1312
    %v1463 = vunpack.c.l.b16 %v1313
    %v1464 = vunpack.c.l.b16 %v1314
    %v1465 = vunpack.c.l.b16 %v1315
    %v1466 = vunpack.c.l.b16 %v1316
    %v1467 = vunpack.c.l.b16 %v1317
    %v1468 = vunpack.c.l.b16 %v1318
    %v1469 = vunpack.c.l.b16 %v1319
    %v1470 = vunpack.c.l.b16 %v1320
    %v1471 = vunpack.c.l.b16 %v1321
    %v1472 = vunpack.c.l.b16 %v1322
    %v1473 = vunpack.c.l.b16 %v1323
    %v1474 = vunpack.c.l.b16 %v1324
    %v1475 = vunpack.c.l.b16 %v1325
    %v1476 = vunpack.c.l.b16 %v1326
    %v1477 = vunpack.c.l.b16 %v1327
    %v1478 = vunpack.c.l.b16 %v1328
    %v1479 = vunpack.c.l.b16 %v1329
    %v1480 = vunpack.c.l.b16 %v1330
    %v1481 = vunpack.c.l.b16 %v1331
    %v1482 = vunpack.c.l.b16 %v1332
    %v1483 = vunpack.c.l.b16 %v1333
    %v1484 = vunpack.c.l.b16 %v1334
    %v1485 = vunpack.c.l.b16 %v1335
    %v1486 = vunpack.c.l.b16 %v1336
    %v1487 = vunpack.c.l.b16 %v1337
    %v1488 = vunpack.c.l.b16 %v1338
    %v1489 = vunpack.c.l.b16 %v1339
    %v1490 = vunpack.c.l.b16 %v1340
    %v1491 = vunpack.c.l.b16 %v1341
    %v1492 = vunpack.c.l.b16 %v1342
    %v1493 = vunpack.c.l.b16 %v1343
    %v1494 = vunpack.c.l.b16 %v1344
    %v1495 = vunpack.c.l.b16 %v1345
    %v1496 = vpack.c.b16 %v1422, %v1421
    %v1497 = vpack.c.b16 %v1424, %v1423
    %v1498 = vpack.c.b16 %v1426, %v1425
    %v1499 = vpack.c.b16 %v1428, %v1427
    %v1500 = vpack.c.b16 %v1430, %v1429
    %v1501 = vpack.c.b16 %v1432, %v1431
    %v1502 = vpack.c.b16 %v1434, %v1433
    %v1503 = vpack.c.b16 %v1436, %v1435
    %v1504 = vpack.c.b16 %v1438, %v1437
    %v1505 = vpack.c.b16 %v1440, %v1439
    %v1506 = vpack.c.b16 %v1442, %v1441
    %v1507 = vpack.c.b16 %v1444, %v1443
    %v1508 = vpack.c.b16 %v1446, %v1445
    %v1509 = vpack.c.b16 %v1448, %v1447
    %v1510 = vpack.c.b16 %v1450, %v1449
    %v1511 = vpack.c.b16 %v1452, %v1451
    %v1512 = vpack.c.b16 %v1454, %v1453
    %v1513 = vpack.c.b16 %v1456, %v1455
    %v1514 = vpack.c.b16 %v1458, %v1457
    %v1515 = vpack.c.b16 %v1460, %v1459
    %v1516 = vpack.c.b16 %v1462, %v1461
    %v1517 = vpack.c.b16 %v1464, %v1463
    %v1518 = vpack.c.b16 %v1466, %v1465
    %v1519 = vpack.c.b16 %v1468, %v1467
    %v1520 = vpack.c.b16 %v1470, %v1469
    %v1521 = vpack.c.b16 %v1472, %v1471
    %v1522 = vpack.c.b16 %v1474, %v1473
    %v1523 = vpack.c.b16 %v1476, %v1475
    %v1524 = vpack.c.b16 %v1478, %v1477
    %v1525 = vpack.c.b16 %v1480, %v1479
    %v1526 = vpack.c.b16 %v1482, %v1481
    %v1527 = vpack.c.b16 %v1484, %v1483
    %v1528 = vpack.c.b16 %v1486, %v1485
    %v1529 = vpack.c.b16 %v1488, %v1487
    %v1530 = vpack.c.b16 %v1490, %v1489
    %v1531 = vpack.c.b16 %v1492, %v1491
    %v1532 = vpack.c.b16 %v1494, %v1493
    %v1533 = vpack.c.b16 %v1495, %v1495
    %v1572 = vsel %vm1144, %v1533, 0
    %1574 = vmatprep.subr.bf16.mxu0 0
    %1575 = vmatpush1.bf16.msra.mxu0 %v1496
    %1576 = vmatprep.subr.bf16.mxu0 0
    %1577 = vmatpush1.bf16.msra.mxu0 %v1497
    %1578 = vmatprep.subr.bf16.mxu0 0
    %1579 = vmatpush1.bf16.msra.mxu0 %v1498
    %1580 = vmatprep.subr.bf16.mxu0 0
    %1581 = vmatpush1.bf16.msra.mxu0 %v1499
    %1582 = vmatprep.subr.bf16.mxu0 0
    %1583 = vmatpush1.bf16.msra.mxu0 %v1500
    %1584 = vmatprep.subr.bf16.mxu0 0
    %1585 = vmatpush1.bf16.msra.mxu0 %v1501
    %1586 = vmatprep.subr.bf16.mxu0 0
    %1587 = vmatpush1.bf16.msra.mxu0 %v1502
    %1588 = vmatprep.subr.bf16.mxu0 0
    %1589 = vmatpush1.bf16.msra.mxu0 %v1503
    %1590 = vmatprep.subr.bf16.mxu0 0
    %1591 = vmatpush1.bf16.msra.mxu0 %v1504
    %1592 = vmatprep.subr.bf16.mxu0 0
    %1593 = vmatpush1.bf16.msra.mxu0 %v1505
    %1594 = vmatprep.subr.bf16.mxu0 0
    %1595 = vmatpush1.bf16.msra.mxu0 %v1506
    %1596 = vmatprep.subr.bf16.mxu0 0
    %1597 = vmatpush1.bf16.msra.mxu0 %v1507
    %1598 = vmatprep.subr.bf16.mxu0 0
    %1599 = vmatpush1.bf16.msra.mxu0 %v1508
    %1600 = vmatprep.subr.bf16.mxu0 0
    %1601 = vmatpush1.bf16.msra.mxu0 %v1509
    %1602 = vmatprep.subr.bf16.mxu0 0
    %1603 = vmatpush1.bf16.msra.mxu0 %v1510
    %1604 = vmatprep.subr.bf16.mxu0 0
    %1605 = vmatpush1.bf16.msra.mxu0 %v1511
    %1606 = vmatprep.mubr.bf16.mxu0 %v907
    %1607 = vmatmul.mubr.bf16.gmra.mrb[0].mxu0 %v906
    %v1608 = vpop.f32.mrb[0].mxu0
    %v1609 = vadd.f32 0.0, %v1608
    %v1610 = vpop.f32.mrb[0].mxu0
    %v1611 = vpop.f32.mrb[0].mxu0
    %v1612 = vadd.f32 0.0, %v1611
    %v1613 = vpop.f32.mrb[0].mxu0
    %1614 = vdwg.mxu0
    %1615 = vmatprep.subr.bf16.mxu0 0
    %1616 = vmatpush1.bf16.msra.mxu0 %v1512
    %1617 = vmatprep.subr.bf16.mxu0 0
    %1618 = vmatpush1.bf16.msra.mxu0 %v1513
    %1619 = vmatprep.subr.bf16.mxu0 0
    %1620 = vmatpush1.bf16.msra.mxu0 %v1514
    %1621 = vmatprep.subr.bf16.mxu0 0
    %1622 = vmatpush1.bf16.msra.mxu0 %v1515
    %1623 = vmatprep.subr.bf16.mxu0 0
    %1624 = vmatpush1.bf16.msra.mxu0 %v1516
    %1625 = vmatprep.subr.bf16.mxu0 0
    %1626 = vmatpush1.bf16.msra.mxu0 %v1517
    %1627 = vmatprep.subr.bf16.mxu0 0
    %1628 = vmatpush1.bf16.msra.mxu0 %v1518
    %1629 = vmatprep.subr.bf16.mxu0 0
    %1630 = vmatpush1.bf16.msra.mxu0 %v1519
    %1631 = vmatprep.subr.bf16.mxu0 0
    %1632 = vmatpush1.bf16.msra.mxu0 %v1520
    %1633 = vmatprep.subr.bf16.mxu0 0
    %1634 = vmatpush1.bf16.msra.mxu0 %v1521
    %1635 = vmatprep.subr.bf16.mxu0 0
    %1636 = vmatpush1.bf16.msra.mxu0 %v1522
    %1637 = vmatprep.subr.bf16.mxu0 0
    %1638 = vmatpush1.bf16.msra.mxu0 %v1523
    %1639 = vmatprep.subr.bf16.mxu0 0
    %1640 = vmatpush1.bf16.msra.mxu0 %v1524
    %1641 = vmatprep.subr.bf16.mxu0 0
    %1642 = vmatpush1.bf16.msra.mxu0 %v1525
    %1643 = vmatprep.subr.bf16.mxu0 0
    %1644 = vmatpush1.bf16.msra.mxu0 %v1526
    %1645 = vmatprep.subr.bf16.mxu0 0
    %1646 = vmatpush1.bf16.msra.mxu0 %v1527
    %1647 = vmatprep.mubr.bf16.mxu0 %v909
    %1648 = vmatmul.mubr.bf16.gmra.mrb[0].mxu0 %v908
    %v1649 = vpop.f32.mrb[0].mxu0
    %v1650 = vadd.f32 %v1609, %v1649
    %v1651 = vpop.f32.mrb[0].mxu0
    %v1652 = vpop.f32.mrb[0].mxu0
    %v1653 = vadd.f32 %v1612, %v1652
    %v1654 = vpop.f32.mrb[0].mxu0
    %1655 = vdwg.mxu0
    %1656 = vmatprep.subr.bf16.mxu0 0
    %1657 = vmatpush1.bf16.msra.mxu0 %v1528
    %1658 = vmatprep.subr.bf16.mxu0 0
    %1659 = vmatpush1.bf16.msra.mxu0 %v1529
    %1660 = vmatprep.subr.bf16.mxu0 0
    %1661 = vmatpush1.bf16.msra.mxu0 %v1530
    %1662 = vmatprep.subr.bf16.mxu0 0
    %1663 = vmatpush1.bf16.msra.mxu0 %v1531
    %1664 = vmatprep.subr.bf16.mxu0 0
    %1665 = vmatpush1.bf16.msra.mxu0 %v1532
    %1666 = vmatprep.subr.bf16.mxu0 0
    %1667 = vmatpush1.bf16.msra.mxu0 %v1572
    %1668 = vmatprep.subr.bf16.mxu0 0
    %1669 = vmatpush1.bf16.msra.mxu0 0
    %1670 = vmatprep.subr.bf16.mxu0 0
    %1671 = vmatpush1.bf16.msra.mxu0 0
    %1672 = vmatprep.subr.bf16.mxu0 0
    %1673 = vmatpush1.bf16.msra.mxu0 0
    %1674 = vmatprep.subr.bf16.mxu0 0
    %1675 = vmatpush1.bf16.msra.mxu0 0
    %1676 = vmatprep.subr.bf16.mxu0 0
    %1677 = vmatpush1.bf16.msra.mxu0 0
    %1678 = vmatprep.subr.bf16.mxu0 0
    %1679 = vmatpush1.bf16.msra.mxu0 0
    %1680 = vmatprep.subr.bf16.mxu0 0
    %1681 = vmatpush1.bf16.msra.mxu0 0
    %1682 = vmatprep.subr.bf16.mxu0 0
    %1683 = vmatpush1.bf16.msra.mxu0 0
    %1684 = vmatprep.subr.bf16.mxu0 0
    %1685 = vmatpush1.bf16.msra.mxu0 0
    %1686 = vmatprep.subr.bf16.mxu0 0
    %1687 = vmatpush1.bf16.msra.mxu0 0
    %1688 = vmatprep.mubr.bf16.mxu0 0
    %1689 = vmatmul.mubr.bf16.gmra.mrb[0].mxu0 %v1142
    %v1690 = vpop.f32.mrb[0].mxu0
    %v1691 = vadd.f32 %v1650, %v1690
    %v1692 = vpop.f32.mrb[0].mxu0
    %v1693 = vpop.f32.mrb[0].mxu0
    %v1694 = vadd.f32 %v1653, %v1693
    %v1695 = vpop.f32.mrb[0].mxu0
    %1696 = vdwg.mxu0
    %v1697 = vmax.f32 %v1265, %v1691
    %v1698 = vmax.f32 %v1268, %v1694
    %v1701 = vcombine.high %v1697, %v1697
    %v1703 = vunpack.c.l.s4 1983009808
    %v1704 = vunpack.c.0.s8 %v1703
    %v1705 = vlaneseq
    %v1706 = vshrl.u32 %v1705, 7
    %v1707 = vsub.s32 %v1704, %v1706
    %v1708 = vrot.slane %v1697, %v1707
    %v1710 = vunpack.c.l.s4 1983009808
    %v1711 = vunpack.c.0.s8 %v1710
    %v1712 = vlaneseq
    %v1713 = vshrl.u32 %v1712, 7
    %v1714 = vsub.s32 %v1711, %v1713
    %v1715 = vrot.slane %v1701, %v1714
    %v1716 = vcombine.high %v1708, %v1708
    %v1717 = vcombine.high %v1715, %v1715
    %v1718 = vcombine.high %v1698, %v1698
    %v1720 = vunpack.c.l.s4 1983009808
    %v1721 = vunpack.c.0.s8 %v1720
    %v1722 = vlaneseq
    %v1723 = vshrl.u32 %v1722, 7
    %v1724 = vsub.s32 %v1721, %v1723
    %v1725 = vrot.slane %v1698, %v1724
    %v1727 = vunpack.c.l.s4 1983009808
    %v1728 = vunpack.c.0.s8 %v1727
    %v1729 = vlaneseq
    %v1730 = vshrl.u32 %v1729, 7
    %v1731 = vsub.s32 %v1728, %v1730
    %v1732 = vrot.slane %v1718, %v1731
    %v1733 = vcombine.high %v1725, %v1725
    %v1734 = vcombine.high %v1732, %v1732
    %vm1743 = vcmask 648192
    %v1744 = vsel %vm1743, %v1708, -inf
    %v1745 = vrot.slane %v1744, 4
    %v1746 = vmax.f32 %v1744, %v1745
    %v1747 = vrot.slane %v1746, 2
    %v1748 = vmax.f32 %v1746, %v1747
    %v1749 = vrot.slane %v1748, 1
    %v1750 = vmax.f32 %v1748, %v1749
    %v1751 = vsel %vm1743, %v1716, -inf
    %v1752 = vrot.slane %v1751, 4
    %v1753 = vmax.f32 %v1751, %v1752
    %v1754 = vrot.slane %v1753, 2
    %v1755 = vmax.f32 %v1753, %v1754
    %v1756 = vrot.slane %v1755, 1
    %v1757 = vmax.f32 %v1755, %v1756
    %v1758 = vsel %vm1743, %v1715, -inf
    %v1759 = vrot.slane %v1758, 4
    %v1760 = vmax.f32 %v1758, %v1759
    %v1761 = vrot.slane %v1760, 2
    %v1762 = vmax.f32 %v1760, %v1761
    %v1763 = vrot.slane %v1762, 1
    %v1764 = vmax.f32 %v1762, %v1763
    %v1765 = vsel %vm1743, %v1717, -inf
    %v1766 = vrot.slane %v1765, 4
    %v1767 = vmax.f32 %v1765, %v1766
    %v1768 = vrot.slane %v1767, 2
    %v1769 = vmax.f32 %v1767, %v1768
    %v1770 = vrot.slane %v1769, 1
    %v1771 = vmax.f32 %v1769, %v1770
    %v1772 = vsel %vm1743, %v1725, -inf
    %v1773 = vrot.slane %v1772, 4
    %v1774 = vmax.f32 %v1772, %v1773
    %v1775 = vrot.slane %v1774, 2
    %v1776 = vmax.f32 %v1774, %v1775
    %v1777 = vrot.slane %v1776, 1
    %v1778 = vmax.f32 %v1776, %v1777
    %v1779 = vsel %vm1743, %v1733, -inf
    %v1780 = vrot.slane %v1779, 4
    %v1781 = vmax.f32 %v1779, %v1780
    %v1782 = vrot.slane %v1781, 2
    %v1783 = vmax.f32 %v1781, %v1782
    %v1784 = vrot.slane %v1783, 1
    %v1785 = vmax.f32 %v1783, %v1784
    %v1786 = vsel %vm1743, %v1732, -inf
    %v1787 = vrot.slane %v1786, 4
    %v1788 = vmax.f32 %v1786, %v1787
    %v1789 = vrot.slane %v1788, 2
    %v1790 = vmax.f32 %v1788, %v1789
    %v1791 = vrot.slane %v1790, 1
    %v1792 = vmax.f32 %v1790, %v1791
    %v1793 = vsel %vm1743, %v1734, -inf
    %v1794 = vrot.slane %v1793, 4
    %v1795 = vmax.f32 %v1793, %v1794
    %v1796 = vrot.slane %v1795, 2
    %v1797 = vmax.f32 %v1795, %v1796
    %v1798 = vrot.slane %v1797, 1
    %v1799 = vmax.f32 %v1797, %v1798
    %v1800 = vld [vmem:[%s7] sm:$0x1]
    %v1802 = vlaneseq
    %v1803 = vshrl.u32 %v1802, 7
    %v1804 = vsub.s32 0, %v1803
    %v1805 = vrot.slane %v1800, %v1804
    %v1807 = vadd.f32 %v1750, %v1805
    %v1808 = vadd.f32 %v1757, %v1805
    %v1809 = vadd.f32 %v1764, %v1805
    %v1810 = vadd.f32 %v1771, %v1805
    %v1811 = vadd.f32 %v1778, %v1805
    %v1812 = vadd.f32 %v1785, %v1805
    %v1813 = vadd.f32 %v1792, %v1805
    %v1814 = vadd.f32 %v1799, %v1805
    %v1815 = vmax.f32 %v1807, 0.0
    %v1816 = vmax.f32 %v1808, 0.0
    %v1817 = vmax.f32 %v1809, 0.0
    %v1818 = vmax.f32 %v1810, 0.0
    %v1819 = vmax.f32 %v1811, 0.0
    %v1820 = vmax.f32 %v1812, 0.0
    %v1821 = vmax.f32 %v1813, 0.0
    %v1822 = vmax.f32 %v1814, 0.0
    %v1831 = vrot.slane %v1816, 7
    %vm1832 = vcmask 1041409
    %v1833 = vsel %vm1832, %v1831, %v1815
    %v1834 = vrot.slane %v1817, 6
    %vm1835 = vcmask 1042434
    %v1836 = vsel %vm1835, %v1834, %v1833
    %v1837 = vrot.slane %v1818, 5
    %vm1838 = vcmask 1043459
    %v1839 = vsel %vm1838, %v1837, %v1836
    %v1840 = vrot.slane %v1820, 7
    %v1841 = vsel %vm1832, %v1840, %v1819
    %v1842 = vrot.slane %v1821, 6
    %v1843 = vsel %vm1835, %v1842, %v1841
    %v1844 = vrot.slane %v1822, 5
    %v1845 = vsel %vm1838, %v1844, %v1843
    %v1848 = vunpack.c.l.s4 1983009808
    %v1849 = vunpack.c.0.s8 %v1848
    %v1850 = vlaneseq
    %v1851 = vshrl.u32 %v1850, 7
    %v1852 = vsub.s32 %v1849, %v1851
    %v1853 = vrot.slane %v1839, %v1852
    %v1856 = vunpack.c.l.s4 1983009808
    %v1857 = vunpack.c.0.s8 %v1856
    %v1858 = vlaneseq
    %v1859 = vshrl.u32 %v1858, 7
    %v1860 = vsub.s32 %v1857, %v1859
    %v1861 = vrot.slane %v1845, %v1860
    %v1862 = vcombine.low %v1853, %v1861
    %v1863 = vcombine.high %v1853, %v1861
    %v1865 = vunpack.c.l.s4 1934713408
    %v1866 = vunpack.c.0.s8 %v1865
    %v1867 = vlaneseq
    %v1868 = vshrl.u32 %v1867, 7
    %v1869 = vsub.s32 %v1866, %v1868
    %v1870 = vrot.slane %v1862, %v1869
    %v1872 = vunpack.c.l.s4 1934713408
    %v1873 = vunpack.c.0.s8 %v1872
    %v1874 = vlaneseq
    %v1875 = vshrl.u32 %v1874, 7
    %v1876 = vsub.s32 %v1873, %v1875
    %v1877 = vrot.slane %v1863, %v1876
    %v1878 = vcombine.high %v1870, 0.0
    %v1879 = vcombine.high %v1877, 0.0
    %1881 = vrot.lane.b32.xlu0 %v1878, 80
    %v1882 = vpop.permute.xlu0 %1881
    %1885 = vrot.lane.b32.xlu0 %v1877, 32
    %v1886 = vpop.permute.xlu0 %1885
    %1889 = vrot.lane.b32.xlu0 %v1879, 112
    %v1890 = vpop.permute.xlu0 %1889
    %vm1892 = vcmask 654336
    %v1893 = vsel %vm1892, %v1870, %v1882
    %vm1894 = vcmask 261120
    %v1895 = vsel %vm1894, %v1882, %v1886
    %v1896 = vsel %vm132, %v1895, %v1890
    %v1897 = vpack.c.bf16 %v1893, %v1893
    %v1898 = vpack.c.bf16 %v1896, %v1896
    %v1899 = vpack.c.bf16 %v1890, %v1890
    %v1900 = vld [vmem:[%s8] sm:$0xf]
    %v1901 = vld [vmem:[%s8 + $0x4] sm:$0xf]
    %v1902 = vld [vmem:[%s8 + $0x8] sm:$0xf]
    %v1903 = vld [vmem:[%s8 + $0xc] sm:$0xf]
    %v1904 = vld [vmem:[%s8 + $0x10] sm:$0xf]
    %v1905 = vld [vmem:[%s8 + $0x14] sm:$0xf]
    %v1906 = vld [vmem:[%s8 + $0x18] sm:$0xf]
    %v1907 = vld [vmem:[%s8 + $0x1c] sm:$0xf]
    %v1908 = vld [vmem:[%s8 + $0x20] sm:$0xf]
    %v1909 = vld [vmem:[%s8 + $0x24] sm:$0xf]
    %v1910 = vld [vmem:[%s8 + $0x28] sm:$0xf]
    %v1911 = vld [vmem:[%s8 + $0x2c] sm:$0xf]
    %v1912 = vld [vmem:[%s8 + $0x30] sm:$0xf]
    %v1913 = vld [vmem:[%s8 + $0x34] sm:$0xf]
    %v1914 = vld [vmem:[%s8 + $0x38] sm:$0xf]
    %v1915 = vld [vmem:[%s8 + $0x3c] sm:$0xf]
    %v1916 = vld [vmem:[%s8 + $0x40] sm:$0xf]
    %v1917 = vld [vmem:[%s8 + $0x44] sm:$0xf]
    %v1918 = vld [vmem:[%s8 + $0x48] sm:$0xf]
    %v1919 = vld [vmem:[%s8 + $0x4c] sm:$0xf]
    %v1920 = vld [vmem:[%s8 + $0x50] sm:$0xf]
    %v1921 = vld [vmem:[%s8 + $0x54] sm:$0xf]
    %v1922 = vld [vmem:[%s8 + $0x58] sm:$0xf]
    %v1923 = vld [vmem:[%s8 + $0x5c] sm:$0xf]
    %v1924 = vld [vmem:[%s8 + $0x60] sm:$0xf]
    %v1925 = vld [vmem:[%s8 + $0x64] sm:$0xf]
    %v1926 = vld [vmem:[%s8 + $0x68] sm:$0xf]
    %v1927 = vld [vmem:[%s8 + $0x6c] sm:$0xf]
    %v1928 = vld [vmem:[%s8 + $0x70] sm:$0xf]
    %v1929 = vld [vmem:[%s8 + $0x74] sm:$0xf]
    %v1930 = vld [vmem:[%s8 + $0x78] sm:$0xf]
    %v1931 = vld [vmem:[%s8 + $0x7c] sm:$0xf]
    %v1932 = vld [vmem:[%s8 + $0x80] sm:$0xf]
    %v1933 = vld [vmem:[%s8 + $0x84] sm:$0xf]
    %v1934 = vld [vmem:[%s8 + $0x88] sm:$0xf]
    %v1935 = vld [vmem:[%s8 + $0x8c] sm:$0xf]
    %v1936 = vld [vmem:[%s8 + $0x90] sm:$0xf]
    %v1937 = vld [vmem:[%s8 + $0x94] sm:$0xf]
    %v1938 = vld [vmem:[%s8 + $0x98] sm:$0xf]
    %v1939 = vld [vmem:[%s8 + $0x9c] sm:$0xf]
    %v1940 = vld [vmem:[%s9] sm:$0x1]
    %v1942 = vlaneseq
    %v1943 = vshrl.u32 %v1942, 7
    %v1944 = vsub.s32 0, %v1943
    %v1945 = vrot.slane %v1940, %v1944
    %v1987 = vunpack.c.l.b16 %v1900
    %v1988 = vunpack.c.l.b16 %v1901
    %v1989 = vunpack.c.l.b16 %v1902
    %v1990 = vunpack.c.l.b16 %v1903
    %v1991 = vunpack.c.l.b16 %v1904
    %v1992 = vunpack.c.l.b16 %v1905
    %v1993 = vunpack.c.l.b16 %v1906
    %v1994 = vunpack.c.l.b16 %v1907
    %v1995 = vunpack.c.l.b16 %v1908
    %v1996 = vunpack.c.l.b16 %v1909
    %v1997 = vunpack.c.l.b16 %v1910
    %v1998 = vunpack.c.l.b16 %v1911
    %v1999 = vunpack.c.l.b16 %v1912
    %v2000 = vunpack.c.l.b16 %v1913
    %v2001 = vunpack.c.l.b16 %v1914
    %v2002 = vunpack.c.l.b16 %v1915
    %v2003 = vunpack.c.l.b16 %v1916
    %v2004 = vunpack.c.l.b16 %v1917
    %v2005 = vunpack.c.l.b16 %v1918
    %v2006 = vunpack.c.l.b16 %v1919
    %v2007 = vunpack.c.l.b16 %v1920
    %v2008 = vunpack.c.l.b16 %v1921
    %v2009 = vunpack.c.l.b16 %v1922
    %v2010 = vunpack.c.l.b16 %v1923
    %v2011 = vunpack.c.l.b16 %v1924
    %v2012 = vunpack.c.l.b16 %v1925
    %v2013 = vunpack.c.l.b16 %v1926
    %v2014 = vunpack.c.l.b16 %v1927
    %v2015 = vunpack.c.l.b16 %v1928
    %v2016 = vunpack.c.l.b16 %v1929
    %v2017 = vunpack.c.l.b16 %v1930
    %v2018 = vunpack.c.l.b16 %v1931
    %v2019 = vunpack.c.l.b16 %v1932
    %v2020 = vunpack.c.l.b16 %v1933
    %v2021 = vunpack.c.l.b16 %v1934
    %v2022 = vunpack.c.l.b16 %v1935
    %v2023 = vunpack.c.l.b16 %v1936
    %v2024 = vunpack.c.l.b16 %v1937
    %v2025 = vunpack.c.l.b16 %v1938
    %v2026 = vunpack.c.l.b16 %v1939
    %v2027 = vpack.c.b16 %v1988, %v1987
    %v2028 = vpack.c.b16 %v1990, %v1989
    %v2029 = vpack.c.b16 %v1992, %v1991
    %v2030 = vpack.c.b16 %v1994, %v1993
    %v2031 = vpack.c.b16 %v1996, %v1995
    %v2032 = vpack.c.b16 %v1998, %v1997
    %v2033 = vpack.c.b16 %v2000, %v1999
    %v2034 = vpack.c.b16 %v2002, %v2001
    %v2035 = vpack.c.b16 %v2004, %v2003
    %v2036 = vpack.c.b16 %v2006, %v2005
    %v2037 = vpack.c.b16 %v2008, %v2007
    %v2038 = vpack.c.b16 %v2010, %v2009
    %v2039 = vpack.c.b16 %v2012, %v2011
    %v2040 = vpack.c.b16 %v2014, %v2013
    %v2041 = vpack.c.b16 %v2016, %v2015
    %v2042 = vpack.c.b16 %v2018, %v2017
    %v2043 = vpack.c.b16 %v2020, %v2019
    %v2044 = vpack.c.b16 %v2022, %v2021
    %v2045 = vpack.c.b16 %v2024, %v2023
    %v2046 = vpack.c.b16 %v2026, %v2025
    %vm2067 = vcmask 523264
    %v2069 = vsel %vm2067, %v1899, 0
    %2071 = vmatprep.subr.bf16.mxu0 0
    %2072 = vmatpush1.bf16.msra.mxu0 %v2027
    %2073 = vmatprep.subr.bf16.mxu0 0
    %2074 = vmatpush1.bf16.msra.mxu0 %v2028
    %2075 = vmatprep.subr.bf16.mxu0 0
    %2076 = vmatpush1.bf16.msra.mxu0 %v2029
    %2077 = vmatprep.subr.bf16.mxu0 0
    %2078 = vmatpush1.bf16.msra.mxu0 %v2030
    %2079 = vmatprep.subr.bf16.mxu0 0
    %2080 = vmatpush1.bf16.msra.mxu0 %v2031
    %2081 = vmatprep.subr.bf16.mxu0 0
    %2082 = vmatpush1.bf16.msra.mxu0 %v2032
    %2083 = vmatprep.subr.bf16.mxu0 0
    %2084 = vmatpush1.bf16.msra.mxu0 %v2033
    %2085 = vmatprep.subr.bf16.mxu0 0
    %2086 = vmatpush1.bf16.msra.mxu0 %v2034
    %2087 = vmatprep.subr.bf16.mxu0 0
    %2088 = vmatpush1.bf16.msra.mxu0 %v2035
    %2089 = vmatprep.subr.bf16.mxu0 0
    %2090 = vmatpush1.bf16.msra.mxu0 %v2036
    %2091 = vmatprep.subr.bf16.mxu0 0
    %2092 = vmatpush1.bf16.msra.mxu0 %v2037
    %2093 = vmatprep.subr.bf16.mxu0 0
    %2094 = vmatpush1.bf16.msra.mxu0 %v2038
    %2095 = vmatprep.subr.bf16.mxu0 0
    %2096 = vmatpush1.bf16.msra.mxu0 %v2039
    %2097 = vmatprep.subr.bf16.mxu0 0
    %2098 = vmatpush1.bf16.msra.mxu0 %v2040
    %2099 = vmatprep.subr.bf16.mxu0 0
    %2100 = vmatpush1.bf16.msra.mxu0 %v2041
    %2101 = vmatprep.subr.bf16.mxu0 0
    %2102 = vmatpush1.bf16.msra.mxu0 %v2042
    %2103 = vmatprep.mubr.bf16.mxu0 %v1898
    %2104 = vmatmul.mubr.bf16.gmra.mrb[0].mxu0 %v1897
    %v2105 = vpop.f32.mrb[0].mxu0
    %v2106 = vadd.f32 %v1945, %v2105
    %v2107 = vpop.f32.mrb[0].mxu0
    %v2108 = vpop.f32.mrb[0].mxu0
    %v2109 = vpop.f32.mrb[0].mxu0
    %2110 = vdwg.mxu0
    %2111 = vmatprep.subr.bf16.mxu0 0
    %2112 = vmatpush1.bf16.msra.mxu0 %v2043
    %2113 = vmatprep.subr.bf16.mxu0 0
    %2114 = vmatpush1.bf16.msra.mxu0 %v2044
    %2115 = vmatprep.subr.bf16.mxu0 0
    %2116 = vmatpush1.bf16.msra.mxu0 %v2045
    %2117 = vmatprep.subr.bf16.mxu0 0
    %2118 = vmatpush1.bf16.msra.mxu0 %v2046
    %2119 = vmatprep.subr.bf16.mxu0 0
    %2120 = vmatpush1.bf16.msra.mxu0 0
    %2121 = vmatprep.subr.bf16.mxu0 0
    %2122 = vmatpush1.bf16.msra.mxu0 0
    %2123 = vmatprep.subr.bf16.mxu0 0
    %2124 = vmatpush1.bf16.msra.mxu0 0
    %2125 = vmatprep.subr.bf16.mxu0 0
    %2126 = vmatpush1.bf16.msra.mxu0 0
    %2127 = vmatprep.subr.bf16.mxu0 0
    %2128 = vmatpush1.bf16.msra.mxu0 0
    %2129 = vmatprep.subr.bf16.mxu0 0
    %2130 = vmatpush1.bf16.msra.mxu0 0
    %2131 = vmatprep.subr.bf16.mxu0 0
    %2132 = vmatpush1.bf16.msra.mxu0 0
    %2133 = vmatprep.subr.bf16.mxu0 0
    %2134 = vmatpush1.bf16.msra.mxu0 0
    %2135 = vmatprep.subr.bf16.mxu0 0
    %2136 = vmatpush1.bf16.msra.mxu0 0
    %2137 = vmatprep.subr.bf16.mxu0 0
    %2138 = vmatpush1.bf16.msra.mxu0 0
    %2139 = vmatprep.subr.bf16.mxu0 0
    %2140 = vmatpush1.bf16.msra.mxu0 0
    %2141 = vmatprep.subr.bf16.mxu0 0
    %2142 = vmatpush1.bf16.msra.mxu0 0
    %2143 = vmatprep.mubr.bf16.mxu0 0
    %2144 = vmatmul.mubr.bf16.gmra.mrb[0].mxu0 %v2069
    %v2145 = vpop.f32.mrb[0].mxu0
    %v2146 = vadd.f32 %v2106, %v2145
    %v2147 = vpop.f32.mrb[0].mxu0
    %v2148 = vpop.f32.mrb[0].mxu0
    %v2149 = vpop.f32.mrb[0].mxu0
    %2150 = vdwg.mxu0
    %v2151 = vmax.f32 %v2146, 0.0
    %v2152 = vpack.c.bf16 %v2151, %v2151
    %v2153 = vld [vmem:[%s10] sm:$0xf]
    %v2154 = vld [vmem:[%s10 + $0x4] sm:$0xf]
    %v2155 = vld [vmem:[%s10 + $0x8] sm:$0xf]
    %v2156 = vld [vmem:[%s10 + $0xc] sm:$0xf]
    %v2157 = vld [vmem:[%s10 + $0x10] sm:$0xf]
    %v2158 = vld [vmem:[%s10 + $0x14] sm:$0xf]
    %v2159 = vld [vmem:[%s10 + $0x18] sm:$0x1]
    %v2160 = vld [vmem:[%s11] sm:$0x1]
    %v2162 = vlaneseq
    %v2163 = vshrl.u32 %v2162, 7
    %v2164 = vsub.s32 0, %v2163
    %v2165 = vrot.slane %v2160, %v2164
    %v2174 = vunpack.c.l.b16 %v2153
    %v2175 = vunpack.c.l.b16 %v2154
    %v2176 = vunpack.c.l.b16 %v2155
    %v2177 = vunpack.c.l.b16 %v2156
    %v2178 = vunpack.c.l.b16 %v2157
    %v2179 = vunpack.c.l.b16 %v2158
    %v2180 = vunpack.c.l.b16 %v2159
    %v2181 = vpack.c.b16 %v2175, %v2174
    %v2182 = vpack.c.b16 %v2177, %v2176
    %v2183 = vpack.c.b16 %v2179, %v2178
    %v2184 = vpack.c.b16 %v2180, %v2180
    %vm2188 = vcmask 408576
    %v2190 = vsel %vm2188, %v2152, 0
    %vm2192 = vcmask 1040384
    %v2194 = vsel %vm2192, %v2184, 0
    %2196 = vmatprep.subr.bf16.mxu0 0
    %2197 = vmatpush1.bf16.msra.mxu0 %v2181
    %2198 = vmatprep.subr.bf16.mxu0 0
    %2199 = vmatpush1.bf16.msra.mxu0 %v2182
    %2200 = vmatprep.subr.bf16.mxu0 0
    %2201 = vmatpush1.bf16.msra.mxu0 %v2183
    %2202 = vmatprep.subr.bf16.mxu0 0
    %2203 = vmatpush1.bf16.msra.mxu0 %v2194
    %2204 = vmatprep.subr.bf16.mxu0 0
    %2205 = vmatpush1.bf16.msra.mxu0 0
    %2206 = vmatprep.subr.bf16.mxu0 0
    %2207 = vmatpush1.bf16.msra.mxu0 0
    %2208 = vmatprep.subr.bf16.mxu0 0
    %2209 = vmatpush1.bf16.msra.mxu0 0
    %2210 = vmatprep.subr.bf16.mxu0 0
    %2211 = vmatpush1.bf16.msra.mxu0 0
    %2212 = vmatprep.subr.bf16.mxu0 0
    %2213 = vmatpush1.bf16.msra.mxu0 0
    %2214 = vmatprep.subr.bf16.mxu0 0
    %2215 = vmatpush1.bf16.msra.mxu0 0
    %2216 = vmatprep.subr.bf16.mxu0 0
    %2217 = vmatpush1.bf16.msra.mxu0 0
    %2218 = vmatprep.subr.bf16.mxu0 0
    %2219 = vmatpush1.bf16.msra.mxu0 0
    %2220 = vmatprep.subr.bf16.mxu0 0
    %2221 = vmatpush1.bf16.msra.mxu0 0
    %2222 = vmatprep.subr.bf16.mxu0 0
    %2223 = vmatpush1.bf16.msra.mxu0 0
    %2224 = vmatprep.subr.bf16.mxu0 0
    %2225 = vmatpush1.bf16.msra.mxu0 0
    %2226 = vmatprep.subr.bf16.mxu0 0
    %2227 = vmatpush1.bf16.msra.mxu0 0
    %2228 = vmatprep.mubr.bf16.mxu0 0
    %2229 = vmatmul.mubr.bf16.gmra.mrb[0].mxu0 %v2190
    %v2230 = vpop.f32.mrb[0].mxu0
    %v2231 = vadd.f32 %v2165, %v2230
    %v2232 = vpop.f32.mrb[0].mxu0
    %v2233 = vpop.f32.mrb[0].mxu0
    %v2234 = vpop.f32.mrb[0].mxu0
    %2235 = vdwg.mxu0
    %vm2236 = vcmask 1041408
    %v2237 = vsel %vm2236, %v2231, -inf
    %2238 = vmax.xlane.f32.xlu0 %v2237
    %v2239 = vpop.xlane.xlu0 %2238
    %v2240 = vsub.f32 %v2231, %v2239
    %v2241 = vmul.f32 %v2240, 1.442695
    %v2242 = vpow.pop %v2241
    %v2243 = vsel %vm2236, %v2242, 0.0
    %2244 = vadd.xlane.f32.xlu0 %v2243
    %v2245 = vpop.xlane.xlu0 %2244
    %v2246 = vlog2.pop %v2245
    %v2247 = vmul.f32 %v2246, 0.6931472
    %v2248 = vadd.f32 %v2239, %v2247
    %v2249 = vsub.f32 %v2231, %v2248
    %2250 = vst [vmem:[#allocation2] sm:$0x3] %v2249
    // Predicated region
    $region50: #{_lambda_.1} parent=1 // pred_check
      _
    $region51: #{_lambda_.1} parent=1 // pred_check_branch
      %2252 = sbr.rel (0) target = $region53
    $region52: #{_lambda_.1} parent=1 // pred_region
      %s2254 = ssub.s32 32, 32
      %2255 = vsyncadd [#allocation3], %s2254
      %s2257 = sshll.u32 [#allocation2], 4
      %s2258 = int_to_ptr.vmem [resolvable:$true] %s2257
      %2260 = dma.vmem_to_hbm [thread:$0]  %s2258, 32, %s12, [#allocation3]
    $region53: #{_lambda_.1} parent=1 // pred_fallthru
      _
    // Predicated region
    $region54: #{_lambda_.1} parent=1 // pred_check
      _
    $region55: #{_lambda_.1} parent=1 // pred_check_branch
      %2262 = sbr.rel (0) target = $region57
    $region56: #{_lambda_.1} parent=1 // pred_region
      %2263 = dma.done [#allocation3], 32
    $region57: #{_lambda_.1} parent=1 // pred_fallthru
      _
    %2264 = vsyncpa [#allocation3], 1

</llo_original>
